<compile_context>
chip_gen: v6e
topology: v6e:2x2x1
jax: 0.10.0
libtpu: 0.0.40
codegen_flags: <defaults>
</compile_context>

<pallas_src>
import functools

import numpy as np
import jax
import jax.numpy as jnp
from jax.experimental import pallas as pl
from jax.experimental.pallas import tpu as pltpu

BN_EPS = 1e-5


# ---------------------------------------------------------------------------
# The fused Pallas kernel: the whole HighResolutionModule forward, VMEM resident
# ---------------------------------------------------------------------------
def _hr_module_kernel(
    x0_ref, x1_ref,
    w0c1_ref, b0c1_ref, w0c2_ref, b0c2_ref,
    w1c1_ref, b1c1_ref, w1c2_ref, b1c2_ref,
    wf01_ref, bf01_ref, wf10_ref, bf10_ref,
    upk_ref, dk_ref, mask0_ref, mask1_ref,
    out0_ref, out1_ref,
    patch0_ref, patch1_ref,
    *, N, H0, W0, H1, W1):
  """Activations are [Cp, N*H*W] (channels on sublanes, flat spatial on lanes).
  3x3 convs = one GEMM against an im2col slab built in-register (pltpu.roll)
  and staged tap-by-tap into a VMEM scratch. Boundary masks are precomputed
  host-side ([8, P] per resolution) — no iota/compare chains in the kernel."""

  def build_patches(x, mask, W, patch_ref):
    # x: [Cp, P] -> patch_ref: [9*Cp, P], rows tap-major ((kh,kw) outer, ch inner)
    Cp, P = x.shape
    mi = 0
    t = 0
    for dy in (-1, 0, 1):
      for dx in (-1, 0, 1):
        if dy == 0 and dx == 0:
          patch_ref[t * Cp:(t + 1) * Cp, :] = x
        else:
          d = dy * W + dx                       # flat-index offset of this tap
          # want shifted[p] = x[p + d]; pltpu.roll follows np.roll semantics.
          # Wrap-around across image/batch boundaries is zeroed by the mask.
          shifted = pltpu.roll(x, (-d) % P, 1)
          patch_ref[t * Cp:(t + 1) * Cp, :] = shifted * mask[mi:mi + 1, :]
          mi += 1
        t += 1

  def conv3x3_bn(x, mask, W, patch_ref, wmat, bias, *, relu, residual=None):
    # BN-folded 3x3 conv as one GEMM; residual add + ReLU fused in the epilogue
    build_patches(x, mask, W, patch_ref)
    y = jnp.dot(wmat, patch_ref[...], preferred_element_type=jnp.float32) + bias
    if residual is not None:
      y = y + residual
    return jnp.maximum(y, 0.0) if relu else y

  x0 = x0_ref[...]            # [8, N*H0*W0]  (C0=4 zero-padded to 8)
  x1 = x1_ref[...]            # [8, N*H1*W1]
  m0 = mask0_ref[...]         # [8, N*H0*W0]  per-tap validity masks (0/1 f32)
  m1 = mask1_ref[...]         # [8, N*H1*W1]

  # ---- branches: one BasicBlock each (conv-bn-relu, conv-bn, +res, relu) ----
  t0 = conv3x3_bn(x0, m0, W0, patch0_ref, w0c1_ref[...], b0c1_ref[...], relu=True)
  b0 = conv3x3_bn(t0, m0, W0, patch0_ref, w0c2_ref[...], b0c2_ref[...], relu=True,
                  residual=x0)

  t1 = conv3x3_bn(x1, m1, W1, patch1_ref, w1c1_ref[...], b1c1_ref[...], relu=True)
  b1 = conv3x3_bn(t1, m1, W1, patch1_ref, w1c2_ref[...], b1c2_ref[...], relu=True,
                  residual=x1)

  P0i, P1i = H0 * W0, H1 * W1

  # ---- fuse i=0: relu(b0 + bilinear_upsample(conv1x1_bn(b1))) ----
  z = jnp.dot(wf01_ref[...], b1, preferred_element_type=jnp.float32) + bf01_ref[...]
  upk = upk_ref[...]                              # per-image Kronecker [H1*W1, H0*W0]
  for n in range(N):                              # tiny static batch loop
    zn = z[:, n * P1i:(n + 1) * P1i]
    upn = jnp.dot(zn, upk, preferred_element_type=jnp.float32)
    out0_ref[:, n * P0i:(n + 1) * P0i] = jnp.maximum(
        b0[:, n * P0i:(n + 1) * P0i] + upn, 0.0)  # 256-lane aligned stores

  # ---- fuse i=1: relu(conv3x3_stride2_bn(b0) + b1), conv-first then select ----
  build_patches(b0, m0, W0, patch0_ref)
  down_full = (jnp.dot(wf10_ref[...], patch0_ref[...],
                       preferred_element_type=jnp.float32) + bf10_ref[...])  # [C1, P0]
  dk = dk_ref[...]                                # per-image 0/1 selection [H0*W0, H1*W1]
  downs = []
  for n in range(N):
    downs.append(jnp.dot(down_full[:, n * P0i:(n + 1) * P0i], dk,
                         preferred_element_type=jnp.float32))
  down = jnp.concatenate(downs, axis=1)           # [C1, N*H1*W1]
  out1_ref[...] = jnp.maximum(down + b1, 0.0)


# ---------------------------------------------------------------------------
# One-time parameter prep (outside the jitted forward): BN folding + operators
# ---------------------------------------------------------------------------
def bilinear_matrix(out_size, in_size):
  """1-D bilinear interpolation matrix, align_corners=True. numpy [out, in]."""
  M = np.zeros((out_size, in_size), np.float32)
  if out_size == 1 or in_size == 1:
    M[:, 0] = 1.0
    return M
  src = np.arange(out_size, dtype=np.float64) * (in_size - 1) / (out_size - 1)
  lo = np.clip(np.floor(src).astype(np.int64), 0, in_size - 1)
  hi = np.clip(lo + 1, 0, in_size - 1)
  frac = (src - lo).astype(np.float32)
  M[np.arange(out_size), lo] += (1.0 - frac)
  M[np.arange(out_size), hi] += frac
  return M


def fold_conv_bn(w, bn, cin_pad=None, cout_pad=None):
  """Fold eval-mode BN into the conv; zero-pad channels for sublane alignment.
  Returns ([Coutp, kh*kw*Cinp] tap-major weight, [Coutp, 1] bias)."""
  gamma, beta, mean, var = bn
  scale = gamma / jnp.sqrt(var + BN_EPS)
  w_f = w * scale[:, None, None, None]
  bias = beta - mean * scale
  cout, cin, kh, kw = w.shape
  coutp = cout if cout_pad is None else cout_pad
  cinp = cin if cin_pad is None else cin_pad
  wt = jnp.transpose(w_f, (0, 2, 3, 1))                              # [cout, kh, kw, cin]
  wt = jnp.pad(wt, ((0, coutp - cout), (0, 0), (0, 0), (0, cinp - cin)))
  wmat = wt.reshape(coutp, kh * kw * cinp)
  bias = jnp.pad(bias, (0, coutp - cout)).reshape(coutp, 1)
  return wmat.astype(jnp.float32), bias.astype(jnp.float32)


def tap_masks(N, H, W):
  """Per-tap boundary-validity masks for the roll-based im2col: [8, N*H*W] f32."""
  P = N * H * W
  pos = np.arange(P)
  hw = pos % (H * W)
  h = hw // W
  w = hw % W
  rows = []
  for dy in (-1, 0, 1):
    for dx in (-1, 0, 1):
      if dy == 0 and dx == 0:
        continue
      valid = (h + dy >= 0) & (h + dy < H) & (w + dx >= 0) & (w + dx < W)
      rows.append(valid.astype(np.float32))
  return np.stack(rows, 0)


def prepare_kernel_params(params, N, H0, W0, H1, W1, C0p=8):
  kp = {}
  kp['w0c1'], kp['b0c1'] = fold_conv_bn(params['branch0']['conv1'],
                                        params['branch0']['bn1'],
                                        cin_pad=C0p, cout_pad=C0p)
  kp['w0c2'], kp['b0c2'] = fold_conv_bn(params['branch0']['conv2'],
                                        params['branch0']['bn2'],
                                        cin_pad=C0p, cout_pad=C0p)
  kp['w1c1'], kp['b1c1'] = fold_conv_bn(params['branch1']['conv1'],
                                        params['branch1']['bn1'])
  kp['w1c2'], kp['b1c2'] = fold_conv_bn(params['branch1']['conv2'],
                                        params['branch1']['bn2'])
  kp['wf01'], kp['bf01'] = fold_conv_bn(params['fuse01_w'], params['fuse01_bn'],
                                        cout_pad=C0p)
  kp['wf10'], kp['bf10'] = fold_conv_bn(params['fuse10_w'], params['fuse10_bn'],
                                        cin_pad=C0p)

  # per-image bilinear (align_corners=True) upsample (H1,W1)->(H0,W0):
  # Uk.T is [H1*W1, H0*W0]; applied with a static loop over N in the kernel.
  Wh = bilinear_matrix(H0, H1)
  Ww = bilinear_matrix(W0, W1)
  Uk = np.kron(Wh, Ww)                              # [H0*W0, H1*W1]
  kp['upk'] = jnp.asarray(np.ascontiguousarray(Uk.T))

  # per-image stride-2 subsample (H0,W0)->(H1,W1) as a 0/1 selection matrix
  D = np.zeros((H0 * W0, H1 * W1), np.float32)
  for ho in range(H1):
    for wo in range(W1):
      D[(2 * ho) * W0 + 2 * wo, ho * W1 + wo] = 1.0
  kp['dk'] = jnp.asarray(D)

  # host-precomputed boundary masks (removes iota/div/mod/compare VPU work)
  kp['mask0'] = jnp.asarray(tap_masks(N, H0, W0))
  kp['mask1'] = jnp.asarray(tap_masks(N, H1, W1))
  return kp


# ---------------------------------------------------------------------------
# Forward: NCHW in/out, one pallas_call in the middle
# ---------------------------------------------------------------------------
def hr_module_forward(x0, x1, kp):
  N, C0, H0, W0 = x0.shape
  _, C1, H1, W1 = x1.shape
  C0p = 8
  P0, P1 = N * H0 * W0, N * H1 * W1

  # layout plumbing only: NCHW -> lane-dense [Cp, N*H*W] (branch-0 padded to 8)
  x0f = jnp.transpose(x0, (1, 0, 2, 3)).reshape(C0, P0)
  x0f = jnp.pad(x0f, ((0, C0p - C0), (0, 0)))
  x1f = jnp.transpose(x1, (1, 0, 2, 3)).reshape(C1, P1)

  kernel = functools.partial(_hr_module_kernel, N=N, H0=H0, W0=W0, H1=H1, W1=W1)
  vmem = pl.BlockSpec(memory_space=pltpu.MemorySpace.VMEM)
  out0f, out1f = pl.pallas_call(
      kernel,
      out_shape=(jax.ShapeDtypeStruct((C0p, P0), jnp.float32),
                 jax.ShapeDtypeStruct((C1, P1), jnp.float32)),
      in_specs=[vmem] * 18,
      out_specs=(vmem, vmem),
      scratch_shapes=[pltpu.VMEM((9 * C0p, P0), jnp.float32),   # im2col slab, H0 res
                      pltpu.VMEM((9 * C1, P1), jnp.float32)],   # im2col slab, H1 res
  )(x0f, x1f,
    kp['w0c1'], kp['b0c1'], kp['w0c2'], kp['b0c2'],
    kp['w1c1'], kp['b1c1'], kp['w1c2'], kp['b1c2'],
    kp['wf01'], kp['bf01'], kp['wf10'], kp['bf10'],
    kp['upk'], kp['dk'], kp['mask0'], kp['mask1'])

  out0 = out0f[:C0].reshape(C0, N, H0, W0).transpose(1, 0, 2, 3)
  out1 = out1f.reshape(C1, N, H1, W1).transpose(1, 0, 2, 3)
  return out0, out1


# ---------------------------------------------------------------------------
# Pure-JAX/XLA reference of the PyTorch forward (eval-mode BN) for verification
# ---------------------------------------------------------------------------
def ref_forward(x_list, params):
  hp = jax.lax.Precision.HIGHEST

  def conv_bn(x, w, bn, stride, relu):
    gamma, beta, mean, var = bn
    scale = gamma / jnp.sqrt(var + BN_EPS)
    pad = w.shape[2] // 2
    y = jax.lax.conv_general_dilated(
        x, w, (stride, stride), ((pad, pad), (pad, pad)),
        dimension_numbers=('NCHW', 'OIHW', 'NCHW'), precision=hp)
    y = y * scale[None, :, None, None] + (beta - mean * scale)[None, :, None, None]
    return jnp.maximum(y, 0.0) if relu else y

  def basic_block(x, p):
    y = conv_bn(x, p['conv1'], p['bn1'], 1, True)
    y = conv_bn(y, p['conv2'], p['bn2'], 1, False)
    return jnp.maximum(y + x, 0.0)

  x0, x1 = x_list
  b0 = basic_block(x0, params['branch0'])
  b1 = basic_block(x1, params['branch1'])

  z = conv_bn(b1, params['fuse01_w'], params['fuse01_bn'], 1, False)
  Wh = jnp.asarray(bilinear_matrix(x0.shape[2], x1.shape[2]))
  Ww = jnp.asarray(bilinear_matrix(x0.shape[3], x1.shape[3]))
  up = jnp.einsum('nchw,Hh,Ww->ncHW', z, Wh, Ww, precision=hp)
  out0 = jnp.maximum(b0 + up, 0.0)

  down = conv_bn(b0, params['fuse10_w'], params['fuse10_bn'], 2, False)
  out1 = jnp.maximum(down + b1, 0.0)
  return out0, out1


# ---------------------------------------------------------------------------
# Deterministic parameter init
# ---------------------------------------------------------------------------
def init_conv(key, cout, cin, kh, kw):
  return 0.1 * jax.random.normal(key, (cout, cin, kh, kw), jnp.float32)


def init_bn(key, c):
  k1, k2, k3, k4 = jax.random.split(key, 4)
  gamma = 1.0 + 0.1 * jax.random.normal(k1, (c,), jnp.float32)
  beta = 0.1 * jax.random.normal(k2, (c,), jnp.float32)
  mean = 0.1 * jax.random.normal(k3, (c,), jnp.float32)
  var = jnp.abs(jax.random.normal(k4, (c,), jnp.float32)) + 0.5
  return (gamma, beta, mean, var)


if __name__ == "__main__":
  # TODO(synk): BatchNorm is eval-mode (running stats folded into the GEMM);
  # PyTorch training-mode batch statistics are not reproduced.
  key = jax.random.PRNGKey(0)
  C = [4, 8]                       # num_inchannels == num_channels (BasicBlock, exp=1)
  keys = jax.random.split(key, 16)

  params = {
      'branch0': {
          'conv1': init_conv(keys[0], C[0], C[0], 3, 3),
          'bn1': init_bn(keys[1], C[0]),
          'conv2': init_conv(keys[2], C[0], C[0], 3, 3),
          'bn2': init_bn(keys[3], C[0]),
      },
      'branch1': {
          'conv1': init_conv(keys[4], C[1], C[1], 3, 3),
          'bn1': init_bn(keys[5], C[1]),
          'conv2': init_conv(keys[6], C[1], C[1], 3, 3),
          'bn2': init_bn(keys[7], C[1]),
      },
      # fuse_layers[0][1]: conv1x1 C1->C0 + BN (then bilinear upsample in forward)
      'fuse01_w': init_conv(keys[8], C[0], C[1], 1, 1),
      'fuse01_bn': init_bn(keys[9], C[0]),
      # fuse_layers[1][0]: conv3x3 stride2 C0->C1 + BN (no ReLU, k == i-j-1)
      'fuse10_w': init_conv(keys[10], C[1], C[0], 3, 3),
      'fuse10_bn': init_bn(keys[11], C[1]),
  }

  N, H0, W0, H1, W1 = 2, 16, 16, 8, 8
  x0 = jax.random.normal(keys[12], (N, C[0], H0, W0), jnp.float32)
  x1 = jax.random.normal(keys[13], (N, C[1], H1, W1), jnp.float32)

  # one-time BN folding + per-image bilinear/stride-2 operators + tap masks
  kp = prepare_kernel_params(params, N, H0, W0, H1, W1)

  fwd = jax.jit(hr_module_forward)
  out0, out1 = jax.block_until_ready(fwd(x0, x1, kp))

  assert out0.shape == (N, C[0], H0, W0)
  assert out1.shape == (N, C[1], H1, W1)
  assert bool(jnp.isfinite(out0).all()) and bool(jnp.isfinite(out1).all())

  # correctness vs a pure-XLA reference of the module forward
  r0, r1 = ref_forward([x0, x1], params)
  np.testing.assert_allclose(np.asarray(out0), np.asarray(r0), rtol=1e-3, atol=1e-3)
  np.testing.assert_allclose(np.asarray(out1), np.asarray(r1), rtol=1e-3, atol=1e-3)

  print("KERNEL_OK")
</pallas_src>

<mosaic_0001>
module attributes {stable_mosaic.version = 11 : i64} {
  func.func @_hr_module_kernel(%arg0: memref<8x512xf32, #tpu.memory_space<vmem>>, %arg1: memref<8x128xf32, #tpu.memory_space<vmem>>, %arg2: memref<8x72xf32, #tpu.memory_space<vmem>>, %arg3: memref<8x1xf32, #tpu.memory_space<vmem>>, %arg4: memref<8x72xf32, #tpu.memory_space<vmem>>, %arg5: memref<8x1xf32, #tpu.memory_space<vmem>>, %arg6: memref<8x72xf32, #tpu.memory_space<vmem>>, %arg7: memref<8x1xf32, #tpu.memory_space<vmem>>, %arg8: memref<8x72xf32, #tpu.memory_space<vmem>>, %arg9: memref<8x1xf32, #tpu.memory_space<vmem>>, %arg10: memref<8x8xf32, #tpu.memory_space<vmem>>, %arg11: memref<8x1xf32, #tpu.memory_space<vmem>>, %arg12: memref<8x72xf32, #tpu.memory_space<vmem>>, %arg13: memref<8x1xf32, #tpu.memory_space<vmem>>, %arg14: memref<64x256xf32, #tpu.memory_space<vmem>>, %arg15: memref<256x64xf32, #tpu.memory_space<vmem>>, %arg16: memref<8x512xf32, #tpu.memory_space<vmem>>, %arg17: memref<8x128xf32, #tpu.memory_space<vmem>>, %arg18: memref<8x512xf32, #tpu.memory_space<vmem>>, %arg19: memref<8x128xf32, #tpu.memory_space<vmem>>, %arg20: memref<72x512xf32, #tpu.memory_space<vmem>>, %arg21: memref<72x128xf32, #tpu.memory_space<vmem>>) attributes {dimension_semantics = [], scalar_prefetch = 0 : i64, scratch_operands = 2 : i64, tpu.core_type = #tpu.core_type<tc>} {
    %c0 = arith.constant 0 : index
    %c0_0 = arith.constant 0 : index
    %0 = vector.load %arg0[%c0, %c0_0] : memref<8x512xf32, #tpu.memory_space<vmem>>, vector<8x512xf32>
    %c0_1 = arith.constant 0 : index
    %c0_2 = arith.constant 0 : index
    %1 = vector.load %arg1[%c0_1, %c0_2] : memref<8x128xf32, #tpu.memory_space<vmem>>, vector<8x128xf32>
    %c0_3 = arith.constant 0 : index
    %c0_4 = arith.constant 0 : index
    %2 = vector.load %arg16[%c0_3, %c0_4] : memref<8x512xf32, #tpu.memory_space<vmem>>, vector<8x512xf32>
    %c0_5 = arith.constant 0 : index
    %c0_6 = arith.constant 0 : index
    %3 = vector.load %arg17[%c0_5, %c0_6] : memref<8x128xf32, #tpu.memory_space<vmem>>, vector<8x128xf32>
    %c0_7 = arith.constant 0 : index
    %c0_8 = arith.constant 0 : index
    %4 = vector.load %arg2[%c0_7, %c0_8] : memref<8x72xf32, #tpu.memory_space<vmem>>, vector<8x72xf32>
    %c0_9 = arith.constant 0 : index
    %c0_10 = arith.constant 0 : index
    %5 = vector.load %arg3[%c0_9, %c0_10] : memref<8x1xf32, #tpu.memory_space<vmem>>, vector<8x1xf32>
    %c17_i32 = arith.constant 17 : i32
    %6 = tpu.dynamic_rotate %0 by %c17_i32 dim 1 : vector<8x512xf32>, i32 -> vector<8x512xf32>
    %7 = vector.extract_strided_slice %2 {offsets = [0, 0], sizes = [1, 512], strides = [1, 1]} : vector<8x512xf32> to vector<1x512xf32>
    %8 = vector.broadcast %7 : vector<1x512xf32> to vector<8x512xf32>
    %9 = arith.mulf %6, %8 : vector<8x512xf32>
    %c0_11 = arith.constant 0 : index
    %c0_12 = arith.constant 0 : index
    %10 = vector.load %arg20[%c0_11, %c0_12] : memref<72x512xf32, #tpu.memory_space<vmem>>, vector<8x512xf32>
    tpu.vector_store %arg20[%c0_11, %c0_12], %9 {strides = array<i32>} : memref<72x512xf32, #tpu.memory_space<vmem>>, vector<8x512xf32>,
    %c16_i32 = arith.constant 16 : i32
    %11 = tpu.dynamic_rotate %0 by %c16_i32 dim 1 : vector<8x512xf32>, i32 -> vector<8x512xf32>
    %12 = vector.extract_strided_slice %2 {offsets = [1, 0], sizes = [1, 512], strides = [1, 1]} : vector<8x512xf32> to vector<1x512xf32>
    %13 = vector.broadcast %12 : vector<1x512xf32> to vector<8x512xf32>
    %14 = arith.mulf %11, %13 : vector<8x512xf32>
    %c8 = arith.constant 8 : index
    %c0_13 = arith.constant 0 : index
    %15 = vector.load %arg20[%c8, %c0_13] : memref<72x512xf32, #tpu.memory_space<vmem>>, vector<8x512xf32>
    tpu.vector_store %arg20[%c8, %c0_13], %14 {strides = array<i32>} : memref<72x512xf32, #tpu.memory_space<vmem>>, vector<8x512xf32>,
    %c15_i32 = arith.constant 15 : i32
    %16 = tpu.dynamic_rotate %0 by %c15_i32 dim 1 : vector<8x512xf32>, i32 -> vector<8x512xf32>
    %17 = vector.extract_strided_slice %2 {offsets = [2, 0], sizes = [1, 512], strides = [1, 1]} : vector<8x512xf32> to vector<1x512xf32>
    %18 = vector.broadcast %17 : vector<1x512xf32> to vector<8x512xf32>
    %19 = arith.mulf %16, %18 : vector<8x512xf32>
    %c16 = arith.constant 16 : index
    %c0_14 = arith.constant 0 : index
    %20 = vector.load %arg20[%c16, %c0_14] : memref<72x512xf32, #tpu.memory_space<vmem>>, vector<8x512xf32>
    tpu.vector_store %arg20[%c16, %c0_14], %19 {strides = array<i32>} : memref<72x512xf32, #tpu.memory_space<vmem>>, vector<8x512xf32>,
    %c1_i32 = arith.constant 1 : i32
    %21 = tpu.dynamic_rotate %0 by %c1_i32 dim 1 : vector<8x512xf32>, i32 -> vector<8x512xf32>
    %22 = vector.extract_strided_slice %2 {offsets = [3, 0], sizes = [1, 512], strides = [1, 1]} : vector<8x512xf32> to vector<1x512xf32>
    %23 = vector.broadcast %22 : vector<1x512xf32> to vector<8x512xf32>
    %24 = arith.mulf %21, %23 : vector<8x512xf32>
    %c24 = arith.constant 24 : index
    %c0_15 = arith.constant 0 : index
    %25 = vector.load %arg20[%c24, %c0_15] : memref<72x512xf32, #tpu.memory_space<vmem>>, vector<8x512xf32>
    tpu.vector_store %arg20[%c24, %c0_15], %24 {strides = array<i32>} : memref<72x512xf32, #tpu.memory_space<vmem>>, vector<8x512xf32>,
    %c32 = arith.constant 32 : index
    %c0_16 = arith.constant 0 : index
    %26 = vector.load %arg20[%c32, %c0_16] : memref<72x512xf32, #tpu.memory_space<vmem>>, vector<8x512xf32>
    tpu.vector_store %arg20[%c32, %c0_16], %0 {strides = array<i32>} : memref<72x512xf32, #tpu.memory_space<vmem>>, vector<8x512xf32>,
    %c511_i32 = arith.constant 511 : i32
    %27 = tpu.dynamic_rotate %0 by %c511_i32 dim 1 : vector<8x512xf32>, i32 -> vector<8x512xf32>
    %28 = vector.extract_strided_slice %2 {offsets = [4, 0], sizes = [1, 512], strides = [1, 1]} : vector<8x512xf32> to vector<1x512xf32>
    %29 = vector.broadcast %28 : vector<1x512xf32> to vector<8x512xf32>
    %30 = arith.mulf %27, %29 : vector<8x512xf32>
    %c40 = arith.constant 40 : index
    %c0_17 = arith.constant 0 : index
    %31 = vector.load %arg20[%c40, %c0_17] : memref<72x512xf32, #tpu.memory_space<vmem>>, vector<8x512xf32>
    tpu.vector_store %arg20[%c40, %c0_17], %30 {strides = array<i32>} : memref<72x512xf32, #tpu.memory_space<vmem>>, vector<8x512xf32>,
    %c497_i32 = arith.constant 497 : i32
    %32 = tpu.dynamic_rotate %0 by %c497_i32 dim 1 : vector<8x512xf32>, i32 -> vector<8x512xf32>
    %33 = vector.extract_strided_slice %2 {offsets = [5, 0], sizes = [1, 512], strides = [1, 1]} : vector<8x512xf32> to vector<1x512xf32>
    %34 = vector.broadcast %33 : vector<1x512xf32> to vector<8x512xf32>
    %35 = arith.mulf %32, %34 : vector<8x512xf32>
    %c48 = arith.constant 48 : index
    %c0_18 = arith.constant 0 : index
    %36 = vector.load %arg20[%c48, %c0_18] : memref<72x512xf32, #tpu.memory_space<vmem>>, vector<8x512xf32>
    tpu.vector_store %arg20[%c48, %c0_18], %35 {strides = array<i32>} : memref<72x512xf32, #tpu.memory_space<vmem>>, vector<8x512xf32>,
    %c496_i32 = arith.constant 496 : i32
    %37 = tpu.dynamic_rotate %0 by %c496_i32 dim 1 : vector<8x512xf32>, i32 -> vector<8x512xf32>
    %38 = vector.extract_strided_slice %2 {offsets = [6, 0], sizes = [1, 512], strides = [1, 1]} : vector<8x512xf32> to vector<1x512xf32>
    %39 = vector.broadcast %38 : vector<1x512xf32> to vector<8x512xf32>
    %40 = arith.mulf %37, %39 : vector<8x512xf32>
    %c56 = arith.constant 56 : index
    %c0_19 = arith.constant 0 : index
    %41 = vector.load %arg20[%c56, %c0_19] : memref<72x512xf32, #tpu.memory_space<vmem>>, vector<8x512xf32>
    tpu.vector_store %arg20[%c56, %c0_19], %40 {strides = array<i32>} : memref<72x512xf32, #tpu.memory_space<vmem>>, vector<8x512xf32>,
    %c495_i32 = arith.constant 495 : i32
    %42 = tpu.dynamic_rotate %0 by %c495_i32 dim 1 : vector<8x512xf32>, i32 -> vector<8x512xf32>
    %43 = vector.extract_strided_slice %2 {offsets = [7, 0], sizes = [1, 512], strides = [1, 1]} : vector<8x512xf32> to vector<1x512xf32>
    %44 = vector.broadcast %43 : vector<1x512xf32> to vector<8x512xf32>
    %45 = arith.mulf %42, %44 : vector<8x512xf32>
    %c64 = arith.constant 64 : index
    %c0_20 = arith.constant 0 : index
    %46 = vector.load %arg20[%c64, %c0_20] : memref<72x512xf32, #tpu.memory_space<vmem>>, vector<8x512xf32>
    tpu.vector_store %arg20[%c64, %c0_20], %45 {strides = array<i32>} : memref<72x512xf32, #tpu.memory_space<vmem>>, vector<8x512xf32>,
    %c0_21 = arith.constant 0 : index
    %c0_22 = arith.constant 0 : index
    %47 = vector.load %arg20[%c0_21, %c0_22] : memref<72x512xf32, #tpu.memory_space<vmem>>, vector<72x512xf32>
    %cst = arith.constant dense<0.000000e+00> : vector<8x512xf32>
    %48 = tpu.matmul %4, %47, %cst {dimension_numbers = #tpu.dot_dimension_numbers<[1], [0], [0], [1], [0, 0, 1, 1], [], []>} : vector<8x72xf32>, vector<72x512xf32>, vector<8x512xf32> -> vector<8x512xf32>
    %49 = vector.broadcast %5 : vector<8x1xf32> to vector<8x512xf32>
    %50 = arith.addf %48, %49 : vector<8x512xf32>
    %cst_23 = arith.constant 0.000000e+00 : f32
    %51 = vector.broadcast %cst_23 : f32 to vector<8x512xf32>
    %52 = arith.maximumf %50, %51 : vector<8x512xf32>
    %c0_24 = arith.constant 0 : index
    %c0_25 = arith.constant 0 : index
    %53 = vector.load %arg4[%c0_24, %c0_25] : memref<8x72xf32, #tpu.memory_space<vmem>>, vector<8x72xf32>
    %c0_26 = arith.constant 0 : index
    %c0_27 = arith.constant 0 : index
    %54 = vector.load %arg5[%c0_26, %c0_27] : memref<8x1xf32, #tpu.memory_space<vmem>>, vector<8x1xf32>
    %c17_i32_28 = arith.constant 17 : i32
    %55 = tpu.dynamic_rotate %52 by %c17_i32_28 dim 1 : vector<8x512xf32>, i32 -> vector<8x512xf32>
    %56 = vector.extract_strided_slice %2 {offsets = [0, 0], sizes = [1, 512], strides = [1, 1]} : vector<8x512xf32> to vector<1x512xf32>
    %57 = vector.broadcast %56 : vector<1x512xf32> to vector<8x512xf32>
    %58 = arith.mulf %55, %57 : vector<8x512xf32>
    %c0_29 = arith.constant 0 : index
    %c0_30 = arith.constant 0 : index
    %59 = vector.load %arg20[%c0_29, %c0_30] : memref<72x512xf32, #tpu.memory_space<vmem>>, vector<8x512xf32>
    tpu.vector_store %arg20[%c0_29, %c0_30], %58 {strides = array<i32>} : memref<72x512xf32, #tpu.memory_space<vmem>>, vector<8x512xf32>,
    %c16_i32_31 = arith.constant 16 : i32
    %60 = tpu.dynamic_rotate %52 by %c16_i32_31 dim 1 : vector<8x512xf32>, i32 -> vector<8x512xf32>
    %61 = vector.extract_strided_slice %2 {offsets = [1, 0], sizes = [1, 512], strides = [1, 1]} : vector<8x512xf32> to vector<1x512xf32>
    %62 = vector.broadcast %61 : vector<1x512xf32> to vector<8x512xf32>
    %63 = arith.mulf %60, %62 : vector<8x512xf32>
    %c8_32 = arith.constant 8 : index
    %c0_33 = arith.constant 0 : index
    %64 = vector.load %arg20[%c8_32, %c0_33] : memref<72x512xf32, #tpu.memory_space<vmem>>, vector<8x512xf32>
    tpu.vector_store %arg20[%c8_32, %c0_33], %63 {strides = array<i32>} : memref<72x512xf32, #tpu.memory_space<vmem>>, vector<8x512xf32>,
    %c15_i32_34 = arith.constant 15 : i32
    %65 = tpu.dynamic_rotate %52 by %c15_i32_34 dim 1 : vector<8x512xf32>, i32 -> vector<8x512xf32>
    %66 = vector.extract_strided_slice %2 {offsets = [2, 0], sizes = [1, 512], strides = [1, 1]} : vector<8x512xf32> to vector<1x512xf32>
    %67 = vector.broadcast %66 : vector<1x512xf32> to vector<8x512xf32>
    %68 = arith.mulf %65, %67 : vector<8x512xf32>
    %c16_35 = arith.constant 16 : index
    %c0_36 = arith.constant 0 : index
    %69 = vector.load %arg20[%c16_35, %c0_36] : memref<72x512xf32, #tpu.memory_space<vmem>>, vector<8x512xf32>
    tpu.vector_store %arg20[%c16_35, %c0_36], %68 {strides = array<i32>} : memref<72x512xf32, #tpu.memory_space<vmem>>, vector<8x512xf32>,
    %c1_i32_37 = arith.constant 1 : i32
    %70 = tpu.dynamic_rotate %52 by %c1_i32_37 dim 1 : vector<8x512xf32>, i32 -> vector<8x512xf32>
    %71 = vector.extract_strided_slice %2 {offsets = [3, 0], sizes = [1, 512], strides = [1, 1]} : vector<8x512xf32> to vector<1x512xf32>
    %72 = vector.broadcast %71 : vector<1x512xf32> to vector<8x512xf32>
    %73 = arith.mulf %70, %72 : vector<8x512xf32>
    %c24_38 = arith.constant 24 : index
    %c0_39 = arith.constant 0 : index
    %74 = vector.load %arg20[%c24_38, %c0_39] : memref<72x512xf32, #tpu.memory_space<vmem>>, vector<8x512xf32>
    tpu.vector_store %arg20[%c24_38, %c0_39], %73 {strides = array<i32>} : memref<72x512xf32, #tpu.memory_space<vmem>>, vector<8x512xf32>,
    %c32_40 = arith.constant 32 : index
    %c0_41 = arith.constant 0 : index
    %75 = vector.load %arg20[%c32_40, %c0_41] : memref<72x512xf32, #tpu.memory_space<vmem>>, vector<8x512xf32>
    tpu.vector_store %arg20[%c32_40, %c0_41], %52 {strides = array<i32>} : memref<72x512xf32, #tpu.memory_space<vmem>>, vector<8x512xf32>,
    %c511_i32_42 = arith.constant 511 : i32
    %76 = tpu.dynamic_rotate %52 by %c511_i32_42 dim 1 : vector<8x512xf32>, i32 -> vector<8x512xf32>
    %77 = vector.extract_strided_slice %2 {offsets = [4, 0], sizes = [1, 512], strides = [1, 1]} : vector<8x512xf32> to vector<1x512xf32>
    %78 = vector.broadcast %77 : vector<1x512xf32> to vector<8x512xf32>
    %79 = arith.mulf %76, %78 : vector<8x512xf32>
    %c40_43 = arith.constant 40 : index
    %c0_44 = arith.constant 0 : index
    %80 = vector.load %arg20[%c40_43, %c0_44] : memref<72x512xf32, #tpu.memory_space<vmem>>, vector<8x512xf32>
    tpu.vector_store %arg20[%c40_43, %c0_44], %79 {strides = array<i32>} : memref<72x512xf32, #tpu.memory_space<vmem>>, vector<8x512xf32>,
    %c497_i32_45 = arith.constant 497 : i32
    %81 = tpu.dynamic_rotate %52 by %c497_i32_45 dim 1 : vector<8x512xf32>, i32 -> vector<8x512xf32>
    %82 = vector.extract_strided_slice %2 {offsets = [5, 0], sizes = [1, 512], strides = [1, 1]} : vector<8x512xf32> to vector<1x512xf32>
    %83 = vector.broadcast %82 : vector<1x512xf32> to vector<8x512xf32>
    %84 = arith.mulf %81, %83 : vector<8x512xf32>
    %c48_46 = arith.constant 48 : index
    %c0_47 = arith.constant 0 : index
    %85 = vector.load %arg20[%c48_46, %c0_47] : memref<72x512xf32, #tpu.memory_space<vmem>>, vector<8x512xf32>
    tpu.vector_store %arg20[%c48_46, %c0_47], %84 {strides = array<i32>} : memref<72x512xf32, #tpu.memory_space<vmem>>, vector<8x512xf32>,
    %c496_i32_48 = arith.constant 496 : i32
    %86 = tpu.dynamic_rotate %52 by %c496_i32_48 dim 1 : vector<8x512xf32>, i32 -> vector<8x512xf32>
    %87 = vector.extract_strided_slice %2 {offsets = [6, 0], sizes = [1, 512], strides = [1, 1]} : vector<8x512xf32> to vector<1x512xf32>
    %88 = vector.broadcast %87 : vector<1x512xf32> to vector<8x512xf32>
    %89 = arith.mulf %86, %88 : vector<8x512xf32>
    %c56_49 = arith.constant 56 : index
    %c0_50 = arith.constant 0 : index
    %90 = vector.load %arg20[%c56_49, %c0_50] : memref<72x512xf32, #tpu.memory_space<vmem>>, vector<8x512xf32>
    tpu.vector_store %arg20[%c56_49, %c0_50], %89 {strides = array<i32>} : memref<72x512xf32, #tpu.memory_space<vmem>>, vector<8x512xf32>,
    %c495_i32_51 = arith.constant 495 : i32
    %91 = tpu.dynamic_rotate %52 by %c495_i32_51 dim 1 : vector<8x512xf32>, i32 -> vector<8x512xf32>
    %92 = vector.extract_strided_slice %2 {offsets = [7, 0], sizes = [1, 512], strides = [1, 1]} : vector<8x512xf32> to vector<1x512xf32>
    %93 = vector.broadcast %92 : vector<1x512xf32> to vector<8x512xf32>
    %94 = arith.mulf %91, %93 : vector<8x512xf32>
    %c64_52 = arith.constant 64 : index
    %c0_53 = arith.constant 0 : index
    %95 = vector.load %arg20[%c64_52, %c0_53] : memref<72x512xf32, #tpu.memory_space<vmem>>, vector<8x512xf32>
    tpu.vector_store %arg20[%c64_52, %c0_53], %94 {strides = array<i32>} : memref<72x512xf32, #tpu.memory_space<vmem>>, vector<8x512xf32>,
    %c0_54 = arith.constant 0 : index
    %c0_55 = arith.constant 0 : index
    %96 = vector.load %arg20[%c0_54, %c0_55] : memref<72x512xf32, #tpu.memory_space<vmem>>, vector<72x512xf32>
    %cst_56 = arith.constant dense<0.000000e+00> : vector<8x512xf32>
    %97 = tpu.matmul %53, %96, %cst_56 {dimension_numbers = #tpu.dot_dimension_numbers<[1], [0], [0], [1], [0, 0, 1, 1], [], []>} : vector<8x72xf32>, vector<72x512xf32>, vector<8x512xf32> -> vector<8x512xf32>
    %98 = vector.broadcast %54 : vector<8x1xf32> to vector<8x512xf32>
    %99 = arith.addf %97, %98 : vector<8x512xf32>
    %100 = arith.addf %99, %0 : vector<8x512xf32>
    %cst_57 = arith.constant 0.000000e+00 : f32
    %101 = vector.broadcast %cst_57 : f32 to vector<8x512xf32>
    %102 = arith.maximumf %100, %101 : vector<8x512xf32>
    %c0_58 = arith.constant 0 : index
    %c0_59 = arith.constant 0 : index
    %103 = vector.load %arg6[%c0_58, %c0_59] : memref<8x72xf32, #tpu.memory_space<vmem>>, vector<8x72xf32>
    %c0_60 = arith.constant 0 : index
    %c0_61 = arith.constant 0 : index
    %104 = vector.load %arg7[%c0_60, %c0_61] : memref<8x1xf32, #tpu.memory_space<vmem>>, vector<8x1xf32>
    %c9_i32 = arith.constant 9 : i32
    %105 = tpu.dynamic_rotate %1 by %c9_i32 dim 1 : vector<8x128xf32>, i32 -> vector<8x128xf32>
    %106 = vector.extract_strided_slice %3 {offsets = [0, 0], sizes = [1, 128], strides = [1, 1]} : vector<8x128xf32> to vector<1x128xf32>
    %107 = vector.broadcast %106 : vector<1x128xf32> to vector<8x128xf32>
    %108 = arith.mulf %105, %107 : vector<8x128xf32>
    %c0_62 = arith.constant 0 : index
    %c0_63 = arith.constant 0 : index
    %109 = vector.load %arg21[%c0_62, %c0_63] : memref<72x128xf32, #tpu.memory_space<vmem>>, vector<8x128xf32>
    tpu.vector_store %arg21[%c0_62, %c0_63], %108 {strides = array<i32>} : memref<72x128xf32, #tpu.memory_space<vmem>>, vector<8x128xf32>,
    %c8_i32 = arith.constant 8 : i32
    %110 = tpu.dynamic_rotate %1 by %c8_i32 dim 1 : vector<8x128xf32>, i32 -> vector<8x128xf32>
    %111 = vector.extract_strided_slice %3 {offsets = [1, 0], sizes = [1, 128], strides = [1, 1]} : vector<8x128xf32> to vector<1x128xf32>
    %112 = vector.broadcast %111 : vector<1x128xf32> to vector<8x128xf32>
    %113 = arith.mulf %110, %112 : vector<8x128xf32>
    %c8_64 = arith.constant 8 : index
    %c0_65 = arith.constant 0 : index
    %114 = vector.load %arg21[%c8_64, %c0_65] : memref<72x128xf32, #tpu.memory_space<vmem>>, vector<8x128xf32>
    tpu.vector_store %arg21[%c8_64, %c0_65], %113 {strides = array<i32>} : memref<72x128xf32, #tpu.memory_space<vmem>>, vector<8x128xf32>,
    %c7_i32 = arith.constant 7 : i32
    %115 = tpu.dynamic_rotate %1 by %c7_i32 dim 1 : vector<8x128xf32>, i32 -> vector<8x128xf32>
    %116 = vector.extract_strided_slice %3 {offsets = [2, 0], sizes = [1, 128], strides = [1, 1]} : vector<8x128xf32> to vector<1x128xf32>
    %117 = vector.broadcast %116 : vector<1x128xf32> to vector<8x128xf32>
    %118 = arith.mulf %115, %117 : vector<8x128xf32>
    %c16_66 = arith.constant 16 : index
    %c0_67 = arith.constant 0 : index
    %119 = vector.load %arg21[%c16_66, %c0_67] : memref<72x128xf32, #tpu.memory_space<vmem>>, vector<8x128xf32>
    tpu.vector_store %arg21[%c16_66, %c0_67], %118 {strides = array<i32>} : memref<72x128xf32, #tpu.memory_space<vmem>>, vector<8x128xf32>,
    %c1_i32_68 = arith.constant 1 : i32
    %120 = tpu.dynamic_rotate %1 by %c1_i32_68 dim 1 : vector<8x128xf32>, i32 -> vector<8x128xf32>
    %121 = vector.extract_strided_slice %3 {offsets = [3, 0], sizes = [1, 128], strides = [1, 1]} : vector<8x128xf32> to vector<1x128xf32>
    %122 = vector.broadcast %121 : vector<1x128xf32> to vector<8x128xf32>
    %123 = arith.mulf %120, %122 : vector<8x128xf32>
    %c24_69 = arith.constant 24 : index
    %c0_70 = arith.constant 0 : index
    %124 = vector.load %arg21[%c24_69, %c0_70] : memref<72x128xf32, #tpu.memory_space<vmem>>, vector<8x128xf32>
    tpu.vector_store %arg21[%c24_69, %c0_70], %123 {strides = array<i32>} : memref<72x128xf32, #tpu.memory_space<vmem>>, vector<8x128xf32>,
    %c32_71 = arith.constant 32 : index
    %c0_72 = arith.constant 0 : index
    %125 = vector.load %arg21[%c32_71, %c0_72] : memref<72x128xf32, #tpu.memory_space<vmem>>, vector<8x128xf32>
    tpu.vector_store %arg21[%c32_71, %c0_72], %1 {strides = array<i32>} : memref<72x128xf32, #tpu.memory_space<vmem>>, vector<8x128xf32>,
    %c127_i32 = arith.constant 127 : i32
    %126 = tpu.dynamic_rotate %1 by %c127_i32 dim 1 : vector<8x128xf32>, i32 -> vector<8x128xf32>
    %127 = vector.extract_strided_slice %3 {offsets = [4, 0], sizes = [1, 128], strides = [1, 1]} : vector<8x128xf32> to vector<1x128xf32>
    %128 = vector.broadcast %127 : vector<1x128xf32> to vector<8x128xf32>
    %129 = arith.mulf %126, %128 : vector<8x128xf32>
    %c40_73 = arith.constant 40 : index
    %c0_74 = arith.constant 0 : index
    %130 = vector.load %arg21[%c40_73, %c0_74] : memref<72x128xf32, #tpu.memory_space<vmem>>, vector<8x128xf32>
    tpu.vector_store %arg21[%c40_73, %c0_74], %129 {strides = array<i32>} : memref<72x128xf32, #tpu.memory_space<vmem>>, vector<8x128xf32>,
    %c121_i32 = arith.constant 121 : i32
    %131 = tpu.dynamic_rotate %1 by %c121_i32 dim 1 : vector<8x128xf32>, i32 -> vector<8x128xf32>
    %132 = vector.extract_strided_slice %3 {offsets = [5, 0], sizes = [1, 128], strides = [1, 1]} : vector<8x128xf32> to vector<1x128xf32>
    %133 = vector.broadcast %132 : vector<1x128xf32> to vector<8x128xf32>
    %134 = arith.mulf %131, %133 : vector<8x128xf32>
    %c48_75 = arith.constant 48 : index
    %c0_76 = arith.constant 0 : index
    %135 = vector.load %arg21[%c48_75, %c0_76] : memref<72x128xf32, #tpu.memory_space<vmem>>, vector<8x128xf32>
    tpu.vector_store %arg21[%c48_75, %c0_76], %134 {strides = array<i32>} : memref<72x128xf32, #tpu.memory_space<vmem>>, vector<8x128xf32>,
    %c120_i32 = arith.constant 120 : i32
    %136 = tpu.dynamic_rotate %1 by %c120_i32 dim 1 : vector<8x128xf32>, i32 -> vector<8x128xf32>
    %137 = vector.extract_strided_slice %3 {offsets = [6, 0], sizes = [1, 128], strides = [1, 1]} : vector<8x128xf32> to vector<1x128xf32>
    %138 = vector.broadcast %137 : vector<1x128xf32> to vector<8x128xf32>
    %139 = arith.mulf %136, %138 : vector<8x128xf32>
    %c56_77 = arith.constant 56 : index
    %c0_78 = arith.constant 0 : index
    %140 = vector.load %arg21[%c56_77, %c0_78] : memref<72x128xf32, #tpu.memory_space<vmem>>, vector<8x128xf32>
    tpu.vector_store %arg21[%c56_77, %c0_78], %139 {strides = array<i32>} : memref<72x128xf32, #tpu.memory_space<vmem>>, vector<8x128xf32>,
    %c119_i32 = arith.constant 119 : i32
    %141 = tpu.dynamic_rotate %1 by %c119_i32 dim 1 : vector<8x128xf32>, i32 -> vector<8x128xf32>
    %142 = vector.extract_strided_slice %3 {offsets = [7, 0], sizes = [1, 128], strides = [1, 1]} : vector<8x128xf32> to vector<1x128xf32>
    %143 = vector.broadcast %142 : vector<1x128xf32> to vector<8x128xf32>
    %144 = arith.mulf %141, %143 : vector<8x128xf32>
    %c64_79 = arith.constant 64 : index
    %c0_80 = arith.constant 0 : index
    %145 = vector.load %arg21[%c64_79, %c0_80] : memref<72x128xf32, #tpu.memory_space<vmem>>, vector<8x128xf32>
    tpu.vector_store %arg21[%c64_79, %c0_80], %144 {strides = array<i32>} : memref<72x128xf32, #tpu.memory_space<vmem>>, vector<8x128xf32>,
    %c0_81 = arith.constant 0 : index
    %c0_82 = arith.constant 0 : index
    %146 = vector.load %arg21[%c0_81, %c0_82] : memref<72x128xf32, #tpu.memory_space<vmem>>, vector<72x128xf32>
    %cst_83 = arith.constant dense<0.000000e+00> : vector<8x128xf32>
    %147 = tpu.matmul %103, %146, %cst_83 {dimension_numbers = #tpu.dot_dimension_numbers<[1], [0], [0], [1], [0, 0, 1, 1], [], []>} : vector<8x72xf32>, vector<72x128xf32>, vector<8x128xf32> -> vector<8x128xf32>
    %148 = vector.broadcast %104 : vector<8x1xf32> to vector<8x128xf32>
    %149 = arith.addf %147, %148 : vector<8x128xf32>
    %cst_84 = arith.constant 0.000000e+00 : f32
    %150 = vector.broadcast %cst_84 : f32 to vector<8x128xf32>
    %151 = arith.maximumf %149, %150 : vector<8x128xf32>
    %c0_85 = arith.constant 0 : index
    %c0_86 = arith.constant 0 : index
    %152 = vector.load %arg8[%c0_85, %c0_86] : memref<8x72xf32, #tpu.memory_space<vmem>>, vector<8x72xf32>
    %c0_87 = arith.constant 0 : index
    %c0_88 = arith.constant 0 : index
    %153 = vector.load %arg9[%c0_87, %c0_88] : memref<8x1xf32, #tpu.memory_space<vmem>>, vector<8x1xf32>
    %c9_i32_89 = arith.constant 9 : i32
    %154 = tpu.dynamic_rotate %151 by %c9_i32_89 dim 1 : vector<8x128xf32>, i32 -> vector<8x128xf32>
    %155 = vector.extract_strided_slice %3 {offsets = [0, 0], sizes = [1, 128], strides = [1, 1]} : vector<8x128xf32> to vector<1x128xf32>
    %156 = vector.broadcast %155 : vector<1x128xf32> to vector<8x128xf32>
    %157 = arith.mulf %154, %156 : vector<8x128xf32>
    %c0_90 = arith.constant 0 : index
    %c0_91 = arith.constant 0 : index
    %158 = vector.load %arg21[%c0_90, %c0_91] : memref<72x128xf32, #tpu.memory_space<vmem>>, vector<8x128xf32>
    tpu.vector_store %arg21[%c0_90, %c0_91], %157 {strides = array<i32>} : memref<72x128xf32, #tpu.memory_space<vmem>>, vector<8x128xf32>,
    %c8_i32_92 = arith.constant 8 : i32
    %159 = tpu.dynamic_rotate %151 by %c8_i32_92 dim 1 : vector<8x128xf32>, i32 -> vector<8x128xf32>
    %160 = vector.extract_strided_slice %3 {offsets = [1, 0], sizes = [1, 128], strides = [1, 1]} : vector<8x128xf32> to vector<1x128xf32>
    %161 = vector.broadcast %160 : vector<1x128xf32> to vector<8x128xf32>
    %162 = arith.mulf %159, %161 : vector<8x128xf32>
    %c8_93 = arith.constant 8 : index
    %c0_94 = arith.constant 0 : index
    %163 = vector.load %arg21[%c8_93, %c0_94] : memref<72x128xf32, #tpu.memory_space<vmem>>, vector<8x128xf32>
    tpu.vector_store %arg21[%c8_93, %c0_94], %162 {strides = array<i32>} : memref<72x128xf32, #tpu.memory_space<vmem>>, vector<8x128xf32>,
    %c7_i32_95 = arith.constant 7 : i32
    %164 = tpu.dynamic_rotate %151 by %c7_i32_95 dim 1 : vector<8x128xf32>, i32 -> vector<8x128xf32>
    %165 = vector.extract_strided_slice %3 {offsets = [2, 0], sizes = [1, 128], strides = [1, 1]} : vector<8x128xf32> to vector<1x128xf32>
    %166 = vector.broadcast %165 : vector<1x128xf32> to vector<8x128xf32>
    %167 = arith.mulf %164, %166 : vector<8x128xf32>
    %c16_96 = arith.constant 16 : index
    %c0_97 = arith.constant 0 : index
    %168 = vector.load %arg21[%c16_96, %c0_97] : memref<72x128xf32, #tpu.memory_space<vmem>>, vector<8x128xf32>
    tpu.vector_store %arg21[%c16_96, %c0_97], %167 {strides = array<i32>} : memref<72x128xf32, #tpu.memory_space<vmem>>, vector<8x128xf32>,
    %c1_i32_98 = arith.constant 1 : i32
    %169 = tpu.dynamic_rotate %151 by %c1_i32_98 dim 1 : vector<8x128xf32>, i32 -> vector<8x128xf32>
    %170 = vector.extract_strided_slice %3 {offsets = [3, 0], sizes = [1, 128], strides = [1, 1]} : vector<8x128xf32> to vector<1x128xf32>
    %171 = vector.broadcast %170 : vector<1x128xf32> to vector<8x128xf32>
    %172 = arith.mulf %169, %171 : vector<8x128xf32>
    %c24_99 = arith.constant 24 : index
    %c0_100 = arith.constant 0 : index
    %173 = vector.load %arg21[%c24_99, %c0_100] : memref<72x128xf32, #tpu.memory_space<vmem>>, vector<8x128xf32>
    tpu.vector_store %arg21[%c24_99, %c0_100], %172 {strides = array<i32>} : memref<72x128xf32, #tpu.memory_space<vmem>>, vector<8x128xf32>,
    %c32_101 = arith.constant 32 : index
    %c0_102 = arith.constant 0 : index
    %174 = vector.load %arg21[%c32_101, %c0_102] : memref<72x128xf32, #tpu.memory_space<vmem>>, vector<8x128xf32>
    tpu.vector_store %arg21[%c32_101, %c0_102], %151 {strides = array<i32>} : memref<72x128xf32, #tpu.memory_space<vmem>>, vector<8x128xf32>,
    %c127_i32_103 = arith.constant 127 : i32
    %175 = tpu.dynamic_rotate %151 by %c127_i32_103 dim 1 : vector<8x128xf32>, i32 -> vector<8x128xf32>
    %176 = vector.extract_strided_slice %3 {offsets = [4, 0], sizes = [1, 128], strides = [1, 1]} : vector<8x128xf32> to vector<1x128xf32>
    %177 = vector.broadcast %176 : vector<1x128xf32> to vector<8x128xf32>
    %178 = arith.mulf %175, %177 : vector<8x128xf32>
    %c40_104 = arith.constant 40 : index
    %c0_105 = arith.constant 0 : index
    %179 = vector.load %arg21[%c40_104, %c0_105] : memref<72x128xf32, #tpu.memory_space<vmem>>, vector<8x128xf32>
    tpu.vector_store %arg21[%c40_104, %c0_105], %178 {strides = array<i32>} : memref<72x128xf32, #tpu.memory_space<vmem>>, vector<8x128xf32>,
    %c121_i32_106 = arith.constant 121 : i32
    %180 = tpu.dynamic_rotate %151 by %c121_i32_106 dim 1 : vector<8x128xf32>, i32 -> vector<8x128xf32>
    %181 = vector.extract_strided_slice %3 {offsets = [5, 0], sizes = [1, 128], strides = [1, 1]} : vector<8x128xf32> to vector<1x128xf32>
    %182 = vector.broadcast %181 : vector<1x128xf32> to vector<8x128xf32>
    %183 = arith.mulf %180, %182 : vector<8x128xf32>
    %c48_107 = arith.constant 48 : index
    %c0_108 = arith.constant 0 : index
    %184 = vector.load %arg21[%c48_107, %c0_108] : memref<72x128xf32, #tpu.memory_space<vmem>>, vector<8x128xf32>
    tpu.vector_store %arg21[%c48_107, %c0_108], %183 {strides = array<i32>} : memref<72x128xf32, #tpu.memory_space<vmem>>, vector<8x128xf32>,
    %c120_i32_109 = arith.constant 120 : i32
    %185 = tpu.dynamic_rotate %151 by %c120_i32_109 dim 1 : vector<8x128xf32>, i32 -> vector<8x128xf32>
    %186 = vector.extract_strided_slice %3 {offsets = [6, 0], sizes = [1, 128], strides = [1, 1]} : vector<8x128xf32> to vector<1x128xf32>
    %187 = vector.broadcast %186 : vector<1x128xf32> to vector<8x128xf32>
    %188 = arith.mulf %185, %187 : vector<8x128xf32>
    %c56_110 = arith.constant 56 : index
    %c0_111 = arith.constant 0 : index
    %189 = vector.load %arg21[%c56_110, %c0_111] : memref<72x128xf32, #tpu.memory_space<vmem>>, vector<8x128xf32>
    tpu.vector_store %arg21[%c56_110, %c0_111], %188 {strides = array<i32>} : memref<72x128xf32, #tpu.memory_space<vmem>>, vector<8x128xf32>,
    %c119_i32_112 = arith.constant 119 : i32
    %190 = tpu.dynamic_rotate %151 by %c119_i32_112 dim 1 : vector<8x128xf32>, i32 -> vector<8x128xf32>
    %191 = vector.extract_strided_slice %3 {offsets = [7, 0], sizes = [1, 128], strides = [1, 1]} : vector<8x128xf32> to vector<1x128xf32>
    %192 = vector.broadcast %191 : vector<1x128xf32> to vector<8x128xf32>
    %193 = arith.mulf %190, %192 : vector<8x128xf32>
    %c64_113 = arith.constant 64 : index
    %c0_114 = arith.constant 0 : index
    %194 = vector.load %arg21[%c64_113, %c0_114] : memref<72x128xf32, #tpu.memory_space<vmem>>, vector<8x128xf32>
    tpu.vector_store %arg21[%c64_113, %c0_114], %193 {strides = array<i32>} : memref<72x128xf32, #tpu.memory_space<vmem>>, vector<8x128xf32>,
    %c0_115 = arith.constant 0 : index
    %c0_116 = arith.constant 0 : index
    %195 = vector.load %arg21[%c0_115, %c0_116] : memref<72x128xf32, #tpu.memory_space<vmem>>, vector<72x128xf32>
    %cst_117 = arith.constant dense<0.000000e+00> : vector<8x128xf32>
    %196 = tpu.matmul %152, %195, %cst_117 {dimension_numbers = #tpu.dot_dimension_numbers<[1], [0], [0], [1], [0, 0, 1, 1], [], []>} : vector<8x72xf32>, vector<72x128xf32>, vector<8x128xf32> -> vector<8x128xf32>
    %197 = vector.broadcast %153 : vector<8x1xf32> to vector<8x128xf32>
    %198 = arith.addf %196, %197 : vector<8x128xf32>
    %199 = arith.addf %198, %1 : vector<8x128xf32>
    %cst_118 = arith.constant 0.000000e+00 : f32
    %200 = vector.broadcast %cst_118 : f32 to vector<8x128xf32>
    %201 = arith.maximumf %199, %200 : vector<8x128xf32>
    %c0_119 = arith.constant 0 : index
    %c0_120 = arith.constant 0 : index
    %202 = vector.load %arg10[%c0_119, %c0_120] : memref<8x8xf32, #tpu.memory_space<vmem>>, vector<8x8xf32>
    %cst_121 = arith.constant dense<0.000000e+00> : vector<8x128xf32>
    %203 = tpu.matmul %202, %201, %cst_121 {dimension_numbers = #tpu.dot_dimension_numbers<[1], [0], [0], [1], [0, 0, 1, 1], [], []>} : vector<8x8xf32>, vector<8x128xf32>, vector<8x128xf32> -> vector<8x128xf32>
    %c0_122 = arith.constant 0 : index
    %c0_123 = arith.constant 0 : index
    %204 = vector.load %arg11[%c0_122, %c0_123] : memref<8x1xf32, #tpu.memory_space<vmem>>, vector<8x1xf32>
    %205 = vector.broadcast %204 : vector<8x1xf32> to vector<8x128xf32>
    %206 = arith.addf %203, %205 : vector<8x128xf32>
    %c0_124 = arith.constant 0 : index
    %c0_125 = arith.constant 0 : index
    %207 = vector.load %arg14[%c0_124, %c0_125] : memref<64x256xf32, #tpu.memory_space<vmem>>, vector<64x256xf32>
    %208 = vector.extract_strided_slice %206 {offsets = [0, 0], sizes = [8, 64], strides = [1, 1]} : vector<8x128xf32> to vector<8x64xf32>
    %cst_126 = arith.constant dense<0.000000e+00> : vector<8x256xf32>
    %209 = tpu.matmul %208, %207, %cst_126 {dimension_numbers = #tpu.dot_dimension_numbers<[1], [0], [0], [1], [0, 0, 1, 1], [], []>} : vector<8x64xf32>, vector<64x256xf32>, vector<8x256xf32> -> vector<8x256xf32>
    %210 = vector.extract_strided_slice %102 {offsets = [0, 0], sizes = [8, 256], strides = [1, 1]} : vector<8x512xf32> to vector<8x256xf32>
    %211 = arith.addf %210, %209 : vector<8x256xf32>
    %cst_127 = arith.constant 0.000000e+00 : f32
    %212 = vector.broadcast %cst_127 : f32 to vector<8x256xf32>
    %213 = arith.maximumf %211, %212 : vector<8x256xf32>
    %c0_128 = arith.constant 0 : index
    %c0_129 = arith.constant 0 : index
    %214 = vector.load %arg18[%c0_128, %c0_129] : memref<8x512xf32, #tpu.memory_space<vmem>>, vector<8x256xf32>
    tpu.vector_store %arg18[%c0_128, %c0_129], %213 {strides = array<i32>} : memref<8x512xf32, #tpu.memory_space<vmem>>, vector<8x256xf32>,
    %215 = vector.extract_strided_slice %206 {offsets = [0, 64], sizes = [8, 64], strides = [1, 1]} : vector<8x128xf32> to vector<8x64xf32>
    %cst_130 = arith.constant dense<0.000000e+00> : vector<8x256xf32>
    %216 = tpu.matmul %215, %207, %cst_130 {dimension_numbers = #tpu.dot_dimension_numbers<[1], [0], [0], [1], [0, 0, 1, 1], [], []>} : vector<8x64xf32>, vector<64x256xf32>, vector<8x256xf32> -> vector<8x256xf32>
    %217 = vector.extract_strided_slice %102 {offsets = [0, 256], sizes = [8, 256], strides = [1, 1]} : vector<8x512xf32> to vector<8x256xf32>
    %218 = arith.addf %217, %216 : vector<8x256xf32>
    %cst_131 = arith.constant 0.000000e+00 : f32
    %219 = vector.broadcast %cst_131 : f32 to vector<8x256xf32>
    %220 = arith.maximumf %218, %219 : vector<8x256xf32>
    %c0_132 = arith.constant 0 : index
    %c256 = arith.constant 256 : index
    %221 = vector.load %arg18[%c0_132, %c256] : memref<8x512xf32, #tpu.memory_space<vmem>>, vector<8x256xf32>
    tpu.vector_store %arg18[%c0_132, %c256], %220 {strides = array<i32>} : memref<8x512xf32, #tpu.memory_space<vmem>>, vector<8x256xf32>,
    %c17_i32_133 = arith.constant 17 : i32
    %222 = tpu.dynamic_rotate %102 by %c17_i32_133 dim 1 : vector<8x512xf32>, i32 -> vector<8x512xf32>
    %223 = vector.extract_strided_slice %2 {offsets = [0, 0], sizes = [1, 512], strides = [1, 1]} : vector<8x512xf32> to vector<1x512xf32>
    %224 = vector.broadcast %223 : vector<1x512xf32> to vector<8x512xf32>
    %225 = arith.mulf %222, %224 : vector<8x512xf32>
    %c0_134 = arith.constant 0 : index
    %c0_135 = arith.constant 0 : index
    %226 = vector.load %arg20[%c0_134, %c0_135] : memref<72x512xf32, #tpu.memory_space<vmem>>, vector<8x512xf32>
    tpu.vector_store %arg20[%c0_134, %c0_135], %225 {strides = array<i32>} : memref<72x512xf32, #tpu.memory_space<vmem>>, vector<8x512xf32>,
    %c16_i32_136 = arith.constant 16 : i32
    %227 = tpu.dynamic_rotate %102 by %c16_i32_136 dim 1 : vector<8x512xf32>, i32 -> vector<8x512xf32>
    %228 = vector.extract_strided_slice %2 {offsets = [1, 0], sizes = [1, 512], strides = [1, 1]} : vector<8x512xf32> to vector<1x512xf32>
    %229 = vector.broadcast %228 : vector<1x512xf32> to vector<8x512xf32>
    %230 = arith.mulf %227, %229 : vector<8x512xf32>
    %c8_137 = arith.constant 8 : index
    %c0_138 = arith.constant 0 : index
    %231 = vector.load %arg20[%c8_137, %c0_138] : memref<72x512xf32, #tpu.memory_space<vmem>>, vector<8x512xf32>
    tpu.vector_store %arg20[%c8_137, %c0_138], %230 {strides = array<i32>} : memref<72x512xf32, #tpu.memory_space<vmem>>, vector<8x512xf32>,
    %c15_i32_139 = arith.constant 15 : i32
    %232 = tpu.dynamic_rotate %102 by %c15_i32_139 dim 1 : vector<8x512xf32>, i32 -> vector<8x512xf32>
    %233 = vector.extract_strided_slice %2 {offsets = [2, 0], sizes = [1, 512], strides = [1, 1]} : vector<8x512xf32> to vector<1x512xf32>
    %234 = vector.broadcast %233 : vector<1x512xf32> to vector<8x512xf32>
    %235 = arith.mulf %232, %234 : vector<8x512xf32>
    %c16_140 = arith.constant 16 : index
    %c0_141 = arith.constant 0 : index
    %236 = vector.load %arg20[%c16_140, %c0_141] : memref<72x512xf32, #tpu.memory_space<vmem>>, vector<8x512xf32>
    tpu.vector_store %arg20[%c16_140, %c0_141], %235 {strides = array<i32>} : memref<72x512xf32, #tpu.memory_space<vmem>>, vector<8x512xf32>,
    %c1_i32_142 = arith.constant 1 : i32
    %237 = tpu.dynamic_rotate %102 by %c1_i32_142 dim 1 : vector<8x512xf32>, i32 -> vector<8x512xf32>
    %238 = vector.extract_strided_slice %2 {offsets = [3, 0], sizes = [1, 512], strides = [1, 1]} : vector<8x512xf32> to vector<1x512xf32>
    %239 = vector.broadcast %238 : vector<1x512xf32> to vector<8x512xf32>
    %240 = arith.mulf %237, %239 : vector<8x512xf32>
    %c24_143 = arith.constant 24 : index
    %c0_144 = arith.constant 0 : index
    %241 = vector.load %arg20[%c24_143, %c0_144] : memref<72x512xf32, #tpu.memory_space<vmem>>, vector<8x512xf32>
    tpu.vector_store %arg20[%c24_143, %c0_144], %240 {strides = array<i32>} : memref<72x512xf32, #tpu.memory_space<vmem>>, vector<8x512xf32>,
    %c32_145 = arith.constant 32 : index
    %c0_146 = arith.constant 0 : index
    %242 = vector.load %arg20[%c32_145, %c0_146] : memref<72x512xf32, #tpu.memory_space<vmem>>, vector<8x512xf32>
    tpu.vector_store %arg20[%c32_145, %c0_146], %102 {strides = array<i32>} : memref<72x512xf32, #tpu.memory_space<vmem>>, vector<8x512xf32>,
    %c511_i32_147 = arith.constant 511 : i32
    %243 = tpu.dynamic_rotate %102 by %c511_i32_147 dim 1 : vector<8x512xf32>, i32 -> vector<8x512xf32>
    %244 = vector.extract_strided_slice %2 {offsets = [4, 0], sizes = [1, 512], strides = [1, 1]} : vector<8x512xf32> to vector<1x512xf32>
    %245 = vector.broadcast %244 : vector<1x512xf32> to vector<8x512xf32>
    %246 = arith.mulf %243, %245 : vector<8x512xf32>
    %c40_148 = arith.constant 40 : index
    %c0_149 = arith.constant 0 : index
    %247 = vector.load %arg20[%c40_148, %c0_149] : memref<72x512xf32, #tpu.memory_space<vmem>>, vector<8x512xf32>
    tpu.vector_store %arg20[%c40_148, %c0_149], %246 {strides = array<i32>} : memref<72x512xf32, #tpu.memory_space<vmem>>, vector<8x512xf32>,
    %c497_i32_150 = arith.constant 497 : i32
    %248 = tpu.dynamic_rotate %102 by %c497_i32_150 dim 1 : vector<8x512xf32>, i32 -> vector<8x512xf32>
    %249 = vector.extract_strided_slice %2 {offsets = [5, 0], sizes = [1, 512], strides = [1, 1]} : vector<8x512xf32> to vector<1x512xf32>
    %250 = vector.broadcast %249 : vector<1x512xf32> to vector<8x512xf32>
    %251 = arith.mulf %248, %250 : vector<8x512xf32>
    %c48_151 = arith.constant 48 : index
    %c0_152 = arith.constant 0 : index
    %252 = vector.load %arg20[%c48_151, %c0_152] : memref<72x512xf32, #tpu.memory_space<vmem>>, vector<8x512xf32>
    tpu.vector_store %arg20[%c48_151, %c0_152], %251 {strides = array<i32>} : memref<72x512xf32, #tpu.memory_space<vmem>>, vector<8x512xf32>,
    %c496_i32_153 = arith.constant 496 : i32
    %253 = tpu.dynamic_rotate %102 by %c496_i32_153 dim 1 : vector<8x512xf32>, i32 -> vector<8x512xf32>
    %254 = vector.extract_strided_slice %2 {offsets = [6, 0], sizes = [1, 512], strides = [1, 1]} : vector<8x512xf32> to vector<1x512xf32>
    %255 = vector.broadcast %254 : vector<1x512xf32> to vector<8x512xf32>
    %256 = arith.mulf %253, %255 : vector<8x512xf32>
    %c56_154 = arith.constant 56 : index
    %c0_155 = arith.constant 0 : index
    %257 = vector.load %arg20[%c56_154, %c0_155] : memref<72x512xf32, #tpu.memory_space<vmem>>, vector<8x512xf32>
    tpu.vector_store %arg20[%c56_154, %c0_155], %256 {strides = array<i32>} : memref<72x512xf32, #tpu.memory_space<vmem>>, vector<8x512xf32>,
    %c495_i32_156 = arith.constant 495 : i32
    %258 = tpu.dynamic_rotate %102 by %c495_i32_156 dim 1 : vector<8x512xf32>, i32 -> vector<8x512xf32>
    %259 = vector.extract_strided_slice %2 {offsets = [7, 0], sizes = [1, 512], strides = [1, 1]} : vector<8x512xf32> to vector<1x512xf32>
    %260 = vector.broadcast %259 : vector<1x512xf32> to vector<8x512xf32>
    %261 = arith.mulf %258, %260 : vector<8x512xf32>
    %c64_157 = arith.constant 64 : index
    %c0_158 = arith.constant 0 : index
    %262 = vector.load %arg20[%c64_157, %c0_158] : memref<72x512xf32, #tpu.memory_space<vmem>>, vector<8x512xf32>
    tpu.vector_store %arg20[%c64_157, %c0_158], %261 {strides = array<i32>} : memref<72x512xf32, #tpu.memory_space<vmem>>, vector<8x512xf32>,
    %c0_159 = arith.constant 0 : index
    %c0_160 = arith.constant 0 : index
    %263 = vector.load %arg12[%c0_159, %c0_160] : memref<8x72xf32, #tpu.memory_space<vmem>>, vector<8x72xf32>
    %c0_161 = arith.constant 0 : index
    %c0_162 = arith.constant 0 : index
    %264 = vector.load %arg20[%c0_161, %c0_162] : memref<72x512xf32, #tpu.memory_space<vmem>>, vector<72x512xf32>
    %cst_163 = arith.constant dense<0.000000e+00> : vector<8x512xf32>
    %265 = tpu.matmul %263, %264, %cst_163 {dimension_numbers = #tpu.dot_dimension_numbers<[1], [0], [0], [1], [0, 0, 1, 1], [], []>} : vector<8x72xf32>, vector<72x512xf32>, vector<8x512xf32> -> vector<8x512xf32>
    %c0_164 = arith.constant 0 : index
    %c0_165 = arith.constant 0 : index
    %266 = vector.load %arg13[%c0_164, %c0_165] : memref<8x1xf32, #tpu.memory_space<vmem>>, vector<8x1xf32>
    %267 = vector.broadcast %266 : vector<8x1xf32> to vector<8x512xf32>
    %268 = arith.addf %265, %267 : vector<8x512xf32>
    %c0_166 = arith.constant 0 : index
    %c0_167 = arith.constant 0 : index
    %269 = vector.load %arg15[%c0_166, %c0_167] : memref<256x64xf32, #tpu.memory_space<vmem>>, vector<256x64xf32>
    %270 = vector.extract_strided_slice %268 {offsets = [0, 0], sizes = [8, 256], strides = [1, 1]} : vector<8x512xf32> to vector<8x256xf32>
    %cst_168 = arith.constant dense<0.000000e+00> : vector<8x64xf32>
    %271 = tpu.matmul %270, %269, %cst_168 {dimension_numbers = #tpu.dot_dimension_numbers<[1], [0], [0], [1], [0, 0, 1, 1], [], []>} : vector<8x256xf32>, vector<256x64xf32>, vector<8x64xf32> -> vector<8x64xf32>
    %272 = vector.extract_strided_slice %268 {offsets = [0, 256], sizes = [8, 256], strides = [1, 1]} : vector<8x512xf32> to vector<8x256xf32>
    %cst_169 = arith.constant dense<0.000000e+00> : vector<8x64xf32>
    %273 = tpu.matmul %272, %269, %cst_169 {dimension_numbers = #tpu.dot_dimension_numbers<[1], [0], [0], [1], [0, 0, 1, 1], [], []>} : vector<8x256xf32>, vector<256x64xf32>, vector<8x64xf32> -> vector<8x64xf32>
    %274 = tpu.concatenate %271, %273 in 1 : vector<8x64xf32>, vector<8x64xf32> -> vector<8x128xf32>
    %275 = arith.addf %274, %201 : vector<8x128xf32>
    %cst_170 = arith.constant 0.000000e+00 : f32
    %276 = vector.broadcast %cst_170 : f32 to vector<8x128xf32>
    %277 = arith.maximumf %275, %276 : vector<8x128xf32>
    %c0_171 = arith.constant 0 : index
    %c0_172 = arith.constant 0 : index
    %278 = vector.load %arg19[%c0_171, %c0_172] : memref<8x128xf32, #tpu.memory_space<vmem>>, vector<8x128xf32>
    tpu.vector_store %arg19[%c0_171, %c0_172], %277 {strides = array<i32>} : memref<8x128xf32, #tpu.memory_space<vmem>>, vector<8x128xf32>,
    return
  }
}

</mosaic_0001>

<llo_original>
// kernel: hr_module_forward.1
$region0: #{hr_module_forward.1}
  #allocation0 [shape = 'u32[]', space=smem, size = 0x4, offset = 0x4, fixed_abs, tag = 'smem constant byte address 0x4 - core index']
  #allocation1 [shape = 'u32[144,128]{1,0:T(1,128)}', space=vmem, size = 0x12000, scoped, tag = 'internal scratch']
  #allocation2 [shape = 'f32[72,512]{1,0:T(8,128)}', space=vmem, size = 0x24000, scoped, tag = 'scratch operand']
  #allocation3 [shape = 'f32[72,128]{1,0:T(8,128)}', space=vmem, size = 0x9000, scoped, tag = 'scratch operand']
  %s0 = inlined_call_operand.vmem [shape: f32[8,512], index: 0, kind: input, shape index: {}]
  %s1 = inlined_call_operand.vmem [shape: f32[8,128], index: 1, kind: input, shape index: {}]
  %s2 = inlined_call_operand.vmem [shape: f32[8,72], index: 2, kind: input, shape index: {}]
  %s3 = inlined_call_operand.vmem [shape: f32[8,1], index: 3, kind: input, shape index: {}]
  %s4 = inlined_call_operand.vmem [shape: f32[8,72], index: 4, kind: input, shape index: {}]
  %s5 = inlined_call_operand.vmem [shape: f32[8,1], index: 5, kind: input, shape index: {}]
  %s6 = inlined_call_operand.vmem [shape: f32[8,72], index: 6, kind: input, shape index: {}]
  %s7 = inlined_call_operand.vmem [shape: f32[8,1], index: 7, kind: input, shape index: {}]
  %s8 = inlined_call_operand.vmem [shape: f32[8,72], index: 8, kind: input, shape index: {}]
  %s9 = inlined_call_operand.vmem [shape: f32[8,1], index: 9, kind: input, shape index: {}]
  %s10 = inlined_call_operand.vmem [shape: f32[8,8], index: 10, kind: input, shape index: {}]
  %s11 = inlined_call_operand.vmem [shape: f32[8,1], index: 11, kind: input, shape index: {}]
  %s12 = inlined_call_operand.vmem [shape: f32[8,72], index: 12, kind: input, shape index: {}]
  %s13 = inlined_call_operand.vmem [shape: f32[8,1], index: 13, kind: input, shape index: {}]
  %s14 = inlined_call_operand.vmem [shape: f32[64,256], index: 14, kind: input, shape index: {}]
  %s15 = inlined_call_operand.vmem [shape: f32[256,64], index: 15, kind: input, shape index: {}]
  %s16 = inlined_call_operand.vmem [shape: f32[8,512], index: 16, kind: input, shape index: {}]
  %s17 = inlined_call_operand.vmem [shape: f32[8,128], index: 17, kind: input, shape index: {}]
  %s18 = inlined_call_operand.vmem [shape: f32[8,512], index: 18, kind: output, shape index: {0}]
  %s19 = inlined_call_operand.vmem [shape: f32[8,128], index: 19, kind: output, shape index: {1}]
  %20 = xla_tuple %s18, %s19
  %s21 = sld [smem:[#allocation0]]
  $region90: #{hr_module_forward.1} parent=0
    _
  %s23 = ssub.s32 1, %s21
  %s24 = scalar_select 0, %s23, %s21
  // Predicated region
  $region2: #{hr_module_forward.1} parent=0 // pred_check
    _
  $region3: #{hr_module_forward.1} parent=0 // pred_check_branch
    %26 = sbr.rel (0) target = $region5
  $region4: #{hr_module_forward.1} parent=0 // pred_region
    _
  $region5: #{hr_module_forward.1} parent=0 // pred_fallthru
    _
  // Predicated region
  $region6: #{hr_module_forward.1} parent=0 // pred_check
    _
  $region7: #{hr_module_forward.1} parent=0 // pred_check_branch
    %28 = sbr.rel (0) target = $region9
  $region8: #{hr_module_forward.1} parent=0 // pred_region
    _
  $region9: #{hr_module_forward.1} parent=0 // pred_fallthru
    _
  // Predicated region
  $region10: #{hr_module_forward.1} parent=0 // pred_check
    _
  $region11: #{hr_module_forward.1} parent=0 // pred_check_branch
    %30 = sbr.rel (0) target = $region13
  $region12: #{hr_module_forward.1} parent=0 // pred_region
    _
  $region13: #{hr_module_forward.1} parent=0 // pred_fallthru
    _
  // Predicated region
  $region14: #{hr_module_forward.1} parent=0 // pred_check
    _
  $region15: #{hr_module_forward.1} parent=0 // pred_check_branch
    %32 = sbr.rel (0) target = $region17
  $region16: #{hr_module_forward.1} parent=0 // pred_region
    _
  $region17: #{hr_module_forward.1} parent=0 // pred_fallthru
    _
  // Predicated region
  $region18: #{hr_module_forward.1} parent=0 // pred_check
    _
  $region19: #{hr_module_forward.1} parent=0 // pred_check_branch
    %34 = sbr.rel (0) target = $region21
  $region20: #{hr_module_forward.1} parent=0 // pred_region
    _
  $region21: #{hr_module_forward.1} parent=0 // pred_fallthru
    _
  // Predicated region
  $region22: #{hr_module_forward.1} parent=0 // pred_check
    _
  $region23: #{hr_module_forward.1} parent=0 // pred_check_branch
    %36 = sbr.rel (0) target = $region25
  $region24: #{hr_module_forward.1} parent=0 // pred_region
    _
  $region25: #{hr_module_forward.1} parent=0 // pred_fallthru
    _
  // Predicated region
  $region26: #{hr_module_forward.1} parent=0 // pred_check
    _
  $region27: #{hr_module_forward.1} parent=0 // pred_check_branch
    %38 = sbr.rel (0) target = $region29
  $region28: #{hr_module_forward.1} parent=0 // pred_region
    _
  $region29: #{hr_module_forward.1} parent=0 // pred_fallthru
    _
  // Predicated region
  $region30: #{hr_module_forward.1} parent=0 // pred_check
    _
  $region31: #{hr_module_forward.1} parent=0 // pred_check_branch
    %40 = sbr.rel (0) target = $region33
  $region32: #{hr_module_forward.1} parent=0 // pred_region
    _
  $region33: #{hr_module_forward.1} parent=0 // pred_fallthru
    _
  // Predicated region
  $region34: #{hr_module_forward.1} parent=0 // pred_check
    _
  $region35: #{hr_module_forward.1} parent=0 // pred_check_branch
    %42 = sbr.rel (0) target = $region37
  $region36: #{hr_module_forward.1} parent=0 // pred_region
    _
  $region37: #{hr_module_forward.1} parent=0 // pred_fallthru
    _
  // Predicated region
  $region38: #{hr_module_forward.1} parent=0 // pred_check
    _
  $region39: #{hr_module_forward.1} parent=0 // pred_check_branch
    %44 = sbr.rel (0) target = $region41
  $region40: #{hr_module_forward.1} parent=0 // pred_region
    _
  $region41: #{hr_module_forward.1} parent=0 // pred_fallthru
    _
  // Predicated region
  $region42: #{hr_module_forward.1} parent=0 // pred_check
    _
  $region43: #{hr_module_forward.1} parent=0 // pred_check_branch
    %46 = sbr.rel (0) target = $region45
  $region44: #{hr_module_forward.1} parent=0 // pred_region
    _
  $region45: #{hr_module_forward.1} parent=0 // pred_fallthru
    _
  // Predicated region
  $region46: #{hr_module_forward.1} parent=0 // pred_check
    _
  $region47: #{hr_module_forward.1} parent=0 // pred_check_branch
    %48 = sbr.rel (0) target = $region49
  $region48: #{hr_module_forward.1} parent=0 // pred_region
    _
  $region49: #{hr_module_forward.1} parent=0 // pred_fallthru
    _
  // Predicated region
  $region50: #{hr_module_forward.1} parent=0 // pred_check
    _
  $region51: #{hr_module_forward.1} parent=0 // pred_check_branch
    %50 = sbr.rel (0) target = $region53
  $region52: #{hr_module_forward.1} parent=0 // pred_region
    _
  $region53: #{hr_module_forward.1} parent=0 // pred_fallthru
    _
  // Predicated region
  $region54: #{hr_module_forward.1} parent=0 // pred_check
    _
  $region55: #{hr_module_forward.1} parent=0 // pred_check_branch
    %52 = sbr.rel (0) target = $region57
  $region56: #{hr_module_forward.1} parent=0 // pred_region
    _
  $region57: #{hr_module_forward.1} parent=0 // pred_fallthru
    _
  // Predicated region
  $region58: #{hr_module_forward.1} parent=0 // pred_check
    _
  $region59: #{hr_module_forward.1} parent=0 // pred_check_branch
    %54 = sbr.rel (0) target = $region61
  $region60: #{hr_module_forward.1} parent=0 // pred_region
    _
  $region61: #{hr_module_forward.1} parent=0 // pred_fallthru
    _
  // Predicated region
  $region62: #{hr_module_forward.1} parent=0 // pred_check
    _
  $region63: #{hr_module_forward.1} parent=0 // pred_check_branch
    %56 = sbr.rel (0) target = $region65
  $region64: #{hr_module_forward.1} parent=0 // pred_region
    _
  $region65: #{hr_module_forward.1} parent=0 // pred_fallthru
    _
  // Predicated region
  $region66: #{hr_module_forward.1} parent=0 // pred_check
    _
  $region67: #{hr_module_forward.1} parent=0 // pred_check_branch
    %58 = sbr.rel (0) target = $region69
  $region68: #{hr_module_forward.1} parent=0 // pred_region
    _
  $region69: #{hr_module_forward.1} parent=0 // pred_fallthru
    _
  // Predicated region
  $region70: #{hr_module_forward.1} parent=0 // pred_check
    _
  $region71: #{hr_module_forward.1} parent=0 // pred_check_branch
    %60 = sbr.rel (0) target = $region73
  $region72: #{hr_module_forward.1} parent=0 // pred_region
    _
  $region73: #{hr_module_forward.1} parent=0 // pred_fallthru
    _
  %v61 = vld [vmem:[%s0] sm:$0xff]
  %v62 = vld [vmem:[%s0 + $0x8] sm:$0xff]
  %v63 = vld [vmem:[%s0 + $0x10] sm:$0xff]
  %v64 = vld [vmem:[%s0 + $0x18] sm:$0xff]
  %v65 = vld [vmem:[%s1] sm:$0xff]
  %v66 = vld [vmem:[%s16] sm:$0xff]
  %v67 = vld [vmem:[%s16 + $0x8] sm:$0xff]
  %v68 = vld [vmem:[%s16 + $0x10] sm:$0xff]
  %v69 = vld [vmem:[%s16 + $0x18] sm:$0xff]
  %v70 = vld [vmem:[%s17] sm:$0xff]
  %v71 = vld [vmem:[%s2] sm:$0xff]
  %v72 = vld [vmem:[%s3] sm:$0xff]
  %73 = vrot.lane.b32.xlu0 %v61, 17
  %v74 = vpop.permute.xlu0 %73
  %75 = vrot.lane.b32.xlu0 %v62, 17
  %v76 = vpop.permute.xlu0 %75
  %77 = vrot.lane.b32.xlu0 %v63, 17
  %v78 = vpop.permute.xlu0 %77
  %79 = vrot.lane.b32.xlu0 %v64, 17
  %v80 = vpop.permute.xlu0 %79
  %v81 = vlaneseq
  %v82 = vand.u32 %v81, 127
  %vm83 = vcmp.lt.s32.totalorder %v82, 17
  %v84 = vsel %vm83, %v78, %v80
  %v85 = vsel %vm83, %v76, %v78
  %v86 = vsel %vm83, %v74, %v76
  %v87 = vsel %vm83, %v80, %v74
  %v88 = vlaneseq
  %v89 = vshrl.u32 %v88, 7
  %v90 = vsub.s32 0, %v89
  %v91 = vrot.slane %v66, %v90
  %v92 = vlaneseq
  %v93 = vshrl.u32 %v92, 7
  %v94 = vsub.s32 0, %v93
  %v95 = vrot.slane %v67, %v94
  %v96 = vlaneseq
  %v97 = vshrl.u32 %v96, 7
  %v98 = vsub.s32 0, %v97
  %v99 = vrot.slane %v68, %v98
  %v100 = vlaneseq
  %v101 = vshrl.u32 %v100, 7
  %v102 = vsub.s32 0, %v101
  %v103 = vrot.slane %v69, %v102
  %v104 = vmul.f32 %v87, %v91
  %v105 = vmul.f32 %v86, %v95
  %v106 = vmul.f32 %v85, %v99
  %v107 = vmul.f32 %v84, %v103
  %108 = vst [vmem:[#allocation2] sm:$0xff] %v104
  %109 = vst [vmem:[#allocation2 + $0x8] sm:$0xff] %v105
  %110 = vst [vmem:[#allocation2 + $0x10] sm:$0xff] %v106
  %111 = vst [vmem:[#allocation2 + $0x18] sm:$0xff] %v107
  %112 = vrot.lane.b32.xlu0 %v61, 16
  %v113 = vpop.permute.xlu0 %112
  %114 = vrot.lane.b32.xlu0 %v62, 16
  %v115 = vpop.permute.xlu0 %114
  %116 = vrot.lane.b32.xlu0 %v63, 16
  %v117 = vpop.permute.xlu0 %116
  %118 = vrot.lane.b32.xlu0 %v64, 16
  %v119 = vpop.permute.xlu0 %118
  %vm120 = vcmp.lt.s32.totalorder %v82, 16
  %v121 = vsel %vm120, %v117, %v119
  %v122 = vsel %vm120, %v115, %v117
  %v123 = vsel %vm120, %v113, %v115
  %v124 = vsel %vm120, %v119, %v113
  %v125 = vlaneseq
  %v126 = vshrl.u32 %v125, 7
  %v127 = vsub.s32 1, %v126
  %v128 = vrot.slane %v66, %v127
  %v129 = vlaneseq
  %v130 = vshrl.u32 %v129, 7
  %v131 = vsub.s32 1, %v130
  %v132 = vrot.slane %v67, %v131
  %v133 = vlaneseq
  %v134 = vshrl.u32 %v133, 7
  %v135 = vsub.s32 1, %v134
  %v136 = vrot.slane %v68, %v135
  %v137 = vlaneseq
  %v138 = vshrl.u32 %v137, 7
  %v139 = vsub.s32 1, %v138
  %v140 = vrot.slane %v69, %v139
  %v141 = vmul.f32 %v124, %v128
  %v142 = vmul.f32 %v123, %v132
  %v143 = vmul.f32 %v122, %v136
  %v144 = vmul.f32 %v121, %v140
  %145 = vst [vmem:[#allocation2 + $0x20] sm:$0xff] %v141
  %146 = vst [vmem:[#allocation2 + $0x28] sm:$0xff] %v142
  %147 = vst [vmem:[#allocation2 + $0x30] sm:$0xff] %v143
  %148 = vst [vmem:[#allocation2 + $0x38] sm:$0xff] %v144
  %149 = vrot.lane.b32.xlu0 %v61, 15
  %v150 = vpop.permute.xlu0 %149
  %151 = vrot.lane.b32.xlu0 %v62, 15
  %v152 = vpop.permute.xlu0 %151
  %153 = vrot.lane.b32.xlu0 %v63, 15
  %v154 = vpop.permute.xlu0 %153
  %155 = vrot.lane.b32.xlu0 %v64, 15
  %v156 = vpop.permute.xlu0 %155
  %vm157 = vcmp.lt.s32.totalorder %v82, 15
  %v158 = vsel %vm157, %v154, %v156
  %v159 = vsel %vm157, %v152, %v154
  %v160 = vsel %vm157, %v150, %v152
  %v161 = vsel %vm157, %v156, %v150
  %v162 = vlaneseq
  %v163 = vshrl.u32 %v162, 7
  %v164 = vsub.s32 2, %v163
  %v165 = vrot.slane %v66, %v164
  %v166 = vlaneseq
  %v167 = vshrl.u32 %v166, 7
  %v168 = vsub.s32 2, %v167
  %v169 = vrot.slane %v67, %v168
  %v170 = vlaneseq
  %v171 = vshrl.u32 %v170, 7
  %v172 = vsub.s32 2, %v171
  %v173 = vrot.slane %v68, %v172
  %v174 = vlaneseq
  %v175 = vshrl.u32 %v174, 7
  %v176 = vsub.s32 2, %v175
  %v177 = vrot.slane %v69, %v176
  %v178 = vmul.f32 %v161, %v165
  %v179 = vmul.f32 %v160, %v169
  %v180 = vmul.f32 %v159, %v173
  %v181 = vmul.f32 %v158, %v177
  %182 = vst [vmem:[#allocation2 + $0x40] sm:$0xff] %v178
  %183 = vst [vmem:[#allocation2 + $0x48] sm:$0xff] %v179
  %184 = vst [vmem:[#allocation2 + $0x50] sm:$0xff] %v180
  %185 = vst [vmem:[#allocation2 + $0x58] sm:$0xff] %v181
  %186 = vrot.lane.b32.xlu0 %v61, 1
  %v187 = vpop.permute.xlu0 %186
  %188 = vrot.lane.b32.xlu0 %v62, 1
  %v189 = vpop.permute.xlu0 %188
  %190 = vrot.lane.b32.xlu0 %v63, 1
  %v191 = vpop.permute.xlu0 %190
  %192 = vrot.lane.b32.xlu0 %v64, 1
  %v193 = vpop.permute.xlu0 %192
  %vm194 = vcmp.lt.s32.totalorder %v82, 1
  %v195 = vsel %vm194, %v191, %v193
  %v196 = vsel %vm194, %v189, %v191
  %v197 = vsel %vm194, %v187, %v189
  %v198 = vsel %vm194, %v193, %v187
  %v199 = vlaneseq
  %v200 = vshrl.u32 %v199, 7
  %v201 = vsub.s32 3, %v200
  %v202 = vrot.slane %v66, %v201
  %v203 = vlaneseq
  %v204 = vshrl.u32 %v203, 7
  %v205 = vsub.s32 3, %v204
  %v206 = vrot.slane %v67, %v205
  %v207 = vlaneseq
  %v208 = vshrl.u32 %v207, 7
  %v209 = vsub.s32 3, %v208
  %v210 = vrot.slane %v68, %v209
  %v211 = vlaneseq
  %v212 = vshrl.u32 %v211, 7
  %v213 = vsub.s32 3, %v212
  %v214 = vrot.slane %v69, %v213
  %v215 = vmul.f32 %v198, %v202
  %v216 = vmul.f32 %v197, %v206
  %v217 = vmul.f32 %v196, %v210
  %v218 = vmul.f32 %v195, %v214
  %219 = vst [vmem:[#allocation2 + $0x60] sm:$0xff] %v215
  %220 = vst [vmem:[#allocation2 + $0x68] sm:$0xff] %v216
  %221 = vst [vmem:[#allocation2 + $0x70] sm:$0xff] %v217
  %222 = vst [vmem:[#allocation2 + $0x78] sm:$0xff] %v218
  %223 = vst [vmem:[#allocation2 + $0x80] sm:$0xff] %v61
  %224 = vst [vmem:[#allocation2 + $0x88] sm:$0xff] %v62
  %225 = vst [vmem:[#allocation2 + $0x90] sm:$0xff] %v63
  %226 = vst [vmem:[#allocation2 + $0x98] sm:$0xff] %v64
  %227 = vrot.lane.b32.xlu0 %v61, 127
  %v228 = vpop.permute.xlu0 %227
  %229 = vrot.lane.b32.xlu0 %v62, 127
  %v230 = vpop.permute.xlu0 %229
  %231 = vrot.lane.b32.xlu0 %v63, 127
  %v232 = vpop.permute.xlu0 %231
  %233 = vrot.lane.b32.xlu0 %v64, 127
  %v234 = vpop.permute.xlu0 %233
  %vm235 = vcmp.lt.s32.totalorder %v82, 127
  %v236 = vsel %vm235, %v232, %v234
  %v237 = vsel %vm235, %v230, %v232
  %v238 = vsel %vm235, %v228, %v230
  %v239 = vsel %vm235, %v234, %v228
  %v240 = vlaneseq
  %v241 = vshrl.u32 %v240, 7
  %v242 = vsub.s32 4, %v241
  %v243 = vrot.slane %v66, %v242
  %v244 = vlaneseq
  %v245 = vshrl.u32 %v244, 7
  %v246 = vsub.s32 4, %v245
  %v247 = vrot.slane %v67, %v246
  %v248 = vlaneseq
  %v249 = vshrl.u32 %v248, 7
  %v250 = vsub.s32 4, %v249
  %v251 = vrot.slane %v68, %v250
  %v252 = vlaneseq
  %v253 = vshrl.u32 %v252, 7
  %v254 = vsub.s32 4, %v253
  %v255 = vrot.slane %v69, %v254
  %v256 = vmul.f32 %v238, %v243
  %v257 = vmul.f32 %v237, %v247
  %v258 = vmul.f32 %v236, %v251
  %v259 = vmul.f32 %v239, %v255
  %260 = vst [vmem:[#allocation2 + $0xa0] sm:$0xff] %v256
  %261 = vst [vmem:[#allocation2 + $0xa8] sm:$0xff] %v257
  %262 = vst [vmem:[#allocation2 + $0xb0] sm:$0xff] %v258
  %263 = vst [vmem:[#allocation2 + $0xb8] sm:$0xff] %v259
  %264 = vrot.lane.b32.xlu0 %v61, 113
  %v265 = vpop.permute.xlu0 %264
  %266 = vrot.lane.b32.xlu0 %v62, 113
  %v267 = vpop.permute.xlu0 %266
  %268 = vrot.lane.b32.xlu0 %v63, 113
  %v269 = vpop.permute.xlu0 %268
  %270 = vrot.lane.b32.xlu0 %v64, 113
  %v271 = vpop.permute.xlu0 %270
  %vm272 = vcmp.lt.s32.totalorder %v82, 113
  %v273 = vsel %vm272, %v269, %v271
  %v274 = vsel %vm272, %v267, %v269
  %v275 = vsel %vm272, %v265, %v267
  %v276 = vsel %vm272, %v271, %v265
  %v277 = vlaneseq
  %v278 = vshrl.u32 %v277, 7
  %v279 = vsub.s32 5, %v278
  %v280 = vrot.slane %v66, %v279
  %v281 = vlaneseq
  %v282 = vshrl.u32 %v281, 7
  %v283 = vsub.s32 5, %v282
  %v284 = vrot.slane %v67, %v283
  %v285 = vlaneseq
  %v286 = vshrl.u32 %v285, 7
  %v287 = vsub.s32 5, %v286
  %v288 = vrot.slane %v68, %v287
  %v289 = vlaneseq
  %v290 = vshrl.u32 %v289, 7
  %v291 = vsub.s32 5, %v290
  %v292 = vrot.slane %v69, %v291
  %v293 = vmul.f32 %v275, %v280
  %v294 = vmul.f32 %v274, %v284
  %v295 = vmul.f32 %v273, %v288
  %v296 = vmul.f32 %v276, %v292
  %297 = vst [vmem:[#allocation2 + $0xc0] sm:$0xff] %v293
  %298 = vst [vmem:[#allocation2 + $0xc8] sm:$0xff] %v294
  %299 = vst [vmem:[#allocation2 + $0xd0] sm:$0xff] %v295
  %300 = vst [vmem:[#allocation2 + $0xd8] sm:$0xff] %v296
  %301 = vrot.lane.b32.xlu0 %v61, 112
  %v302 = vpop.permute.xlu0 %301
  %303 = vrot.lane.b32.xlu0 %v62, 112
  %v304 = vpop.permute.xlu0 %303
  %305 = vrot.lane.b32.xlu0 %v63, 112
  %v306 = vpop.permute.xlu0 %305
  %307 = vrot.lane.b32.xlu0 %v64, 112
  %v308 = vpop.permute.xlu0 %307
  %vm309 = vcmp.lt.s32.totalorder %v82, 112
  %v310 = vsel %vm309, %v306, %v308
  %v311 = vsel %vm309, %v304, %v306
  %v312 = vsel %vm309, %v302, %v304
  %v313 = vsel %vm309, %v308, %v302
  %v314 = vlaneseq
  %v315 = vshrl.u32 %v314, 7
  %v316 = vsub.s32 6, %v315
  %v317 = vrot.slane %v66, %v316
  %v318 = vlaneseq
  %v319 = vshrl.u32 %v318, 7
  %v320 = vsub.s32 6, %v319
  %v321 = vrot.slane %v67, %v320
  %v322 = vlaneseq
  %v323 = vshrl.u32 %v322, 7
  %v324 = vsub.s32 6, %v323
  %v325 = vrot.slane %v68, %v324
  %v326 = vlaneseq
  %v327 = vshrl.u32 %v326, 7
  %v328 = vsub.s32 6, %v327
  %v329 = vrot.slane %v69, %v328
  %v330 = vmul.f32 %v312, %v317
  %v331 = vmul.f32 %v311, %v321
  %v332 = vmul.f32 %v310, %v325
  %v333 = vmul.f32 %v313, %v329
  %334 = vst [vmem:[#allocation2 + $0xe0] sm:$0xff] %v330
  %335 = vst [vmem:[#allocation2 + $0xe8] sm:$0xff] %v331
  %336 = vst [vmem:[#allocation2 + $0xf0] sm:$0xff] %v332
  %337 = vst [vmem:[#allocation2 + $0xf8] sm:$0xff] %v333
  %338 = vrot.lane.b32.xlu0 %v61, 111
  %v339 = vpop.permute.xlu0 %338
  %340 = vrot.lane.b32.xlu0 %v62, 111
  %v341 = vpop.permute.xlu0 %340
  %342 = vrot.lane.b32.xlu0 %v63, 111
  %v343 = vpop.permute.xlu0 %342
  %344 = vrot.lane.b32.xlu0 %v64, 111
  %v345 = vpop.permute.xlu0 %344
  %vm346 = vcmp.lt.s32.totalorder %v82, 111
  %v347 = vsel %vm346, %v343, %v345
  %v348 = vsel %vm346, %v341, %v343
  %v349 = vsel %vm346, %v339, %v341
  %v350 = vsel %vm346, %v345, %v339
  %v351 = vlaneseq
  %v352 = vshrl.u32 %v351, 7
  %v353 = vsub.s32 7, %v352
  %v354 = vrot.slane %v66, %v353
  %v355 = vlaneseq
  %v356 = vshrl.u32 %v355, 7
  %v357 = vsub.s32 7, %v356
  %v358 = vrot.slane %v67, %v357
  %v359 = vlaneseq
  %v360 = vshrl.u32 %v359, 7
  %v361 = vsub.s32 7, %v360
  %v362 = vrot.slane %v68, %v361
  %v363 = vlaneseq
  %v364 = vshrl.u32 %v363, 7
  %v365 = vsub.s32 7, %v364
  %v366 = vrot.slane %v69, %v365
  %v367 = vmul.f32 %v349, %v354
  %v368 = vmul.f32 %v348, %v358
  %v369 = vmul.f32 %v347, %v362
  %v370 = vmul.f32 %v350, %v366
  %371 = vst [vmem:[#allocation2 + $0x100] sm:$0xff] %v367
  %372 = vst [vmem:[#allocation2 + $0x108] sm:$0xff] %v368
  %373 = vst [vmem:[#allocation2 + $0x110] sm:$0xff] %v369
  %374 = vst [vmem:[#allocation2 + $0x118] sm:$0xff] %v370
  %v375 = vld [vmem:[#allocation2] sm:$0xff]
  %v376 = vld [vmem:[#allocation2 + $0x8] sm:$0xff]
  %v377 = vld [vmem:[#allocation2 + $0x10] sm:$0xff]
  %v378 = vld [vmem:[#allocation2 + $0x18] sm:$0xff]
  %v379 = vld [vmem:[#allocation2 + $0x20] sm:$0xff]
  %v380 = vld [vmem:[#allocation2 + $0x28] sm:$0xff]
  %v381 = vld [vmem:[#allocation2 + $0x30] sm:$0xff]
  %v382 = vld [vmem:[#allocation2 + $0x38] sm:$0xff]
  %v383 = vld [vmem:[#allocation2 + $0x40] sm:$0xff]
  %v384 = vld [vmem:[#allocation2 + $0x48] sm:$0xff]
  %v385 = vld [vmem:[#allocation2 + $0x50] sm:$0xff]
  %v386 = vld [vmem:[#allocation2 + $0x58] sm:$0xff]
  %v387 = vld [vmem:[#allocation2 + $0x60] sm:$0xff]
  %v388 = vld [vmem:[#allocation2 + $0x68] sm:$0xff]
  %v389 = vld [vmem:[#allocation2 + $0x70] sm:$0xff]
  %v390 = vld [vmem:[#allocation2 + $0x78] sm:$0xff]
  %v391 = vld [vmem:[#allocation2 + $0x80] sm:$0xff]
  %v392 = vld [vmem:[#allocation2 + $0x88] sm:$0xff]
  %v393 = vld [vmem:[#allocation2 + $0x90] sm:$0xff]
  %v394 = vld [vmem:[#allocation2 + $0x98] sm:$0xff]
  %v395 = vld [vmem:[#allocation2 + $0xa0] sm:$0xff]
  %v396 = vld [vmem:[#allocation2 + $0xa8] sm:$0xff]
  %v397 = vld [vmem:[#allocation2 + $0xb0] sm:$0xff]
  %v398 = vld [vmem:[#allocation2 + $0xb8] sm:$0xff]
  %v399 = vld [vmem:[#allocation2 + $0xc0] sm:$0xff]
  %v400 = vld [vmem:[#allocation2 + $0xc8] sm:$0xff]
  %v401 = vld [vmem:[#allocation2 + $0xd0] sm:$0xff]
  %v402 = vld [vmem:[#allocation2 + $0xd8] sm:$0xff]
  %v403 = vld [vmem:[#allocation2 + $0xe0] sm:$0xff]
  %v404 = vld [vmem:[#allocation2 + $0xe8] sm:$0xff]
  %v405 = vld [vmem:[#allocation2 + $0xf0] sm:$0xff]
  %v406 = vld [vmem:[#allocation2 + $0xf8] sm:$0xff]
  %v407 = vld [vmem:[#allocation2 + $0x100] sm:$0xff]
  %v408 = vld [vmem:[#allocation2 + $0x108] sm:$0xff]
  %v409 = vld [vmem:[#allocation2 + $0x110] sm:$0xff]
  %v410 = vld [vmem:[#allocation2 + $0x118] sm:$0xff]
  %412 = vset.pattern.permute.xlu0 0
  %413 = vperm.xlu0 %412, %v72
  %v414 = vpop.permute.xlu0 %413
  %vm416 = vcmask 588800
  %v418 = vsel %vm416, %v71, 0
  %420 = vmatprep.subr.mxu0 0.0
  %421 = vmatpush1.msra.mxu0 0.0
  %422 = vmatprep.subr.mxu0 0.0
  %423 = vmatpush1.msra.mxu0 0.0
  %424 = vmatprep.subr.mxu0 0.0
  %425 = vmatpush1.msra.mxu0 0.0
  %426 = vmatprep.subr.mxu0 0.0
  %427 = vmatpush1.msra.mxu0 0.0
  %428 = vmatprep.subr.mxu0 0.0
  %429 = vmatpush1.msra.mxu0 0.0
  %430 = vmatprep.subr.mxu0 0.0
  %431 = vmatpush1.msra.mxu0 0.0
  %432 = vmatprep.subr.mxu0 0.0
  %433 = vmatpush1.msra.mxu0 0.0
  %434 = vmatprep.subr.mxu0 %v408
  %435 = vmatpush1.msra.mxu0 %v407
  %436 = vmatprep.subr.mxu0 %v404
  %437 = vmatpush1.msra.mxu0 %v403
  %438 = vmatprep.subr.mxu0 %v400
  %439 = vmatpush1.msra.mxu0 %v399
  %440 = vmatprep.subr.mxu0 %v396
  %441 = vmatpush1.msra.mxu0 %v395
  %442 = vmatprep.subr.mxu0 %v392
  %443 = vmatpush1.msra.mxu0 %v391
  %444 = vmatprep.subr.mxu0 %v388
  %445 = vmatpush1.msra.mxu0 %v387
  %446 = vmatprep.subr.mxu0 %v384
  %447 = vmatpush1.msra.mxu0 %v383
  %448 = vmatprep.subr.mxu0 %v380
  %449 = vmatpush1.msra.mxu0 %v379
  %450 = vmatprep.subr.mxu0 %v376
  %451 = vmatpush1.msra.mxu0 %v375
  %452 = vmatprep.subr.mxu0 0.0
  %453 = vmatpush2.msra.mxu0 0.0
  %454 = vmatprep.subr.mxu0 0.0
  %455 = vmatpush2.msra.mxu0 0.0
  %456 = vmatprep.subr.mxu0 0.0
  %457 = vmatpush2.msra.mxu0 0.0
  %458 = vmatprep.subr.mxu0 0.0
  %459 = vmatpush2.msra.mxu0 0.0
  %460 = vmatprep.subr.mxu0 0.0
  %461 = vmatpush2.msra.mxu0 0.0
  %462 = vmatprep.subr.mxu0 0.0
  %463 = vmatpush2.msra.mxu0 0.0
  %464 = vmatprep.subr.mxu0 0.0
  %465 = vmatpush2.msra.mxu0 0.0
  %466 = vmatprep.subr.mxu0 0.0
  %467 = vmatpush2.msra.mxu0 0.0
  %468 = vmatprep.subr.mxu0 0.0
  %469 = vmatpush2.msra.mxu0 0.0
  %470 = vmatprep.subr.mxu0 0.0
  %471 = vmatpush2.msra.mxu0 0.0
  %472 = vmatprep.subr.mxu0 0.0
  %473 = vmatpush2.msra.mxu0 0.0
  %474 = vmatprep.subr.mxu0 0.0
  %475 = vmatpush2.msra.mxu0 0.0
  %476 = vmatprep.subr.mxu0 0.0
  %477 = vmatpush2.msra.mxu0 0.0
  %478 = vmatprep.subr.mxu0 0.0
  %479 = vmatpush2.msra.mxu0 0.0
  %480 = vmatprep.subr.mxu0 0.0
  %481 = vmatpush2.msra.mxu0 0.0
  %482 = vmatprep.subr.mxu0 0.0
  %483 = vmatpush2.msra.mxu0 0.0
  %484 = vmatprep.mubr.f32.mxu0 0.0
  %485 = vmatmul.mubr.f32.gmra.mxu0 %v418
  %v486 = vpop.f32.mrf.mxu0
  %v487 = vadd.f32 %v414, %v486
  %v488 = vpop.f32.mrf.mxu0
  %v489 = vadd.f32 %v414, %v488
  %490 = vdwg.mxu0
  %491 = vmatprep.subr.mxu0 0.0
  %492 = vmatpush1.msra.mxu0 0.0
  %493 = vmatprep.subr.mxu0 0.0
  %494 = vmatpush1.msra.mxu0 0.0
  %495 = vmatprep.subr.mxu0 0.0
  %496 = vmatpush1.msra.mxu0 0.0
  %497 = vmatprep.subr.mxu0 0.0
  %498 = vmatpush1.msra.mxu0 0.0
  %499 = vmatprep.subr.mxu0 0.0
  %500 = vmatpush1.msra.mxu0 0.0
  %501 = vmatprep.subr.mxu0 0.0
  %502 = vmatpush1.msra.mxu0 0.0
  %503 = vmatprep.subr.mxu0 0.0
  %504 = vmatpush1.msra.mxu0 0.0
  %505 = vmatprep.subr.mxu0 %v410
  %506 = vmatpush1.msra.mxu0 %v409
  %507 = vmatprep.subr.mxu0 %v406
  %508 = vmatpush1.msra.mxu0 %v405
  %509 = vmatprep.subr.mxu0 %v402
  %510 = vmatpush1.msra.mxu0 %v401
  %511 = vmatprep.subr.mxu0 %v398
  %512 = vmatpush1.msra.mxu0 %v397
  %513 = vmatprep.subr.mxu0 %v394
  %514 = vmatpush1.msra.mxu0 %v393
  %515 = vmatprep.subr.mxu0 %v390
  %516 = vmatpush1.msra.mxu0 %v389
  %517 = vmatprep.subr.mxu0 %v386
  %518 = vmatpush1.msra.mxu0 %v385
  %519 = vmatprep.subr.mxu0 %v382
  %520 = vmatpush1.msra.mxu0 %v381
  %521 = vmatprep.subr.mxu0 %v378
  %522 = vmatpush1.msra.mxu0 %v377
  %523 = vmatprep.subr.mxu0 0.0
  %524 = vmatpush2.msra.mxu0 0.0
  %525 = vmatprep.subr.mxu0 0.0
  %526 = vmatpush2.msra.mxu0 0.0
  %527 = vmatprep.subr.mxu0 0.0
  %528 = vmatpush2.msra.mxu0 0.0
  %529 = vmatprep.subr.mxu0 0.0
  %530 = vmatpush2.msra.mxu0 0.0
  %531 = vmatprep.subr.mxu0 0.0
  %532 = vmatpush2.msra.mxu0 0.0
  %533 = vmatprep.subr.mxu0 0.0
  %534 = vmatpush2.msra.mxu0 0.0
  %535 = vmatprep.subr.mxu0 0.0
  %536 = vmatpush2.msra.mxu0 0.0
  %537 = vmatprep.subr.mxu0 0.0
  %538 = vmatpush2.msra.mxu0 0.0
  %539 = vmatprep.subr.mxu0 0.0
  %540 = vmatpush2.msra.mxu0 0.0
  %541 = vmatprep.subr.mxu0 0.0
  %542 = vmatpush2.msra.mxu0 0.0
  %543 = vmatprep.subr.mxu0 0.0
  %544 = vmatpush2.msra.mxu0 0.0
  %545 = vmatprep.subr.mxu0 0.0
  %546 = vmatpush2.msra.mxu0 0.0
  %547 = vmatprep.subr.mxu0 0.0
  %548 = vmatpush2.msra.mxu0 0.0
  %549 = vmatprep.subr.mxu0 0.0
  %550 = vmatpush2.msra.mxu0 0.0
  %551 = vmatprep.subr.mxu0 0.0
  %552 = vmatpush2.msra.mxu0 0.0
  %553 = vmatprep.subr.mxu0 0.0
  %554 = vmatpush2.msra.mxu0 0.0
  %555 = vmatprep.mubr.f32.mxu0 0.0
  %556 = vmatmul.mubr.f32.gmra.mxu0 %v418
  %v557 = vpop.f32.mrf.mxu0
  %v558 = vadd.f32 %v414, %v557
  %v559 = vpop.f32.mrf.mxu0
  %v560 = vadd.f32 %v414, %v559
  %561 = vdwg.mxu0
  %v562 = vmax.f32 %v487, 0.0
  %v563 = vmax.f32 %v489, 0.0
  %v564 = vmax.f32 %v558, 0.0
  %v565 = vmax.f32 %v560, 0.0
  %v566 = vld [vmem:[%s4] sm:$0xff]
  %v567 = vld [vmem:[%s5] sm:$0xff]
  %568 = vrot.lane.b32.xlu0 %v562, 17
  %v569 = vpop.permute.xlu0 %568
  %570 = vrot.lane.b32.xlu0 %v563, 17
  %v571 = vpop.permute.xlu0 %570
  %572 = vrot.lane.b32.xlu0 %v564, 17
  %v573 = vpop.permute.xlu0 %572
  %574 = vrot.lane.b32.xlu0 %v565, 17
  %v575 = vpop.permute.xlu0 %574
  %v576 = vsel %vm83, %v573, %v575
  %v577 = vsel %vm83, %v571, %v573
  %v578 = vsel %vm83, %v569, %v571
  %v579 = vsel %vm83, %v575, %v569
  %v580 = vmul.f32 %v579, %v91
  %v581 = vmul.f32 %v578, %v95
  %v582 = vmul.f32 %v577, %v99
  %v583 = vmul.f32 %v576, %v103
  %584 = vst [vmem:[#allocation2] sm:$0xff] %v580
  %585 = vst [vmem:[#allocation2 + $0x8] sm:$0xff] %v581
  %586 = vst [vmem:[#allocation2 + $0x10] sm:$0xff] %v582
  %587 = vst [vmem:[#allocation2 + $0x18] sm:$0xff] %v583
  %588 = vrot.lane.b32.xlu0 %v562, 16
  %v589 = vpop.permute.xlu0 %588
  %590 = vrot.lane.b32.xlu0 %v563, 16
  %v591 = vpop.permute.xlu0 %590
  %592 = vrot.lane.b32.xlu0 %v564, 16
  %v593 = vpop.permute.xlu0 %592
  %594 = vrot.lane.b32.xlu0 %v565, 16
  %v595 = vpop.permute.xlu0 %594
  %v596 = vsel %vm120, %v593, %v595
  %v597 = vsel %vm120, %v591, %v593
  %v598 = vsel %vm120, %v589, %v591
  %v599 = vsel %vm120, %v595, %v589
  %v600 = vmul.f32 %v599, %v128
  %v601 = vmul.f32 %v598, %v132
  %v602 = vmul.f32 %v597, %v136
  %v603 = vmul.f32 %v596, %v140
  %604 = vst [vmem:[#allocation2 + $0x20] sm:$0xff] %v600
  %605 = vst [vmem:[#allocation2 + $0x28] sm:$0xff] %v601
  %606 = vst [vmem:[#allocation2 + $0x30] sm:$0xff] %v602
  %607 = vst [vmem:[#allocation2 + $0x38] sm:$0xff] %v603
  %608 = vrot.lane.b32.xlu0 %v562, 15
  %v609 = vpop.permute.xlu0 %608
  %610 = vrot.lane.b32.xlu0 %v563, 15
  %v611 = vpop.permute.xlu0 %610
  %612 = vrot.lane.b32.xlu0 %v564, 15
  %v613 = vpop.permute.xlu0 %612
  %614 = vrot.lane.b32.xlu0 %v565, 15
  %v615 = vpop.permute.xlu0 %614
  %v616 = vsel %vm157, %v613, %v615
  %v617 = vsel %vm157, %v611, %v613
  %v618 = vsel %vm157, %v609, %v611
  %v619 = vsel %vm157, %v615, %v609
  %v620 = vmul.f32 %v619, %v165
  %v621 = vmul.f32 %v618, %v169
  %v622 = vmul.f32 %v617, %v173
  %v623 = vmul.f32 %v616, %v177
  %624 = vst [vmem:[#allocation2 + $0x40] sm:$0xff] %v620
  %625 = vst [vmem:[#allocation2 + $0x48] sm:$0xff] %v621
  %626 = vst [vmem:[#allocation2 + $0x50] sm:$0xff] %v622
  %627 = vst [vmem:[#allocation2 + $0x58] sm:$0xff] %v623
  %628 = vrot.lane.b32.xlu0 %v562, 1
  %v629 = vpop.permute.xlu0 %628
  %630 = vrot.lane.b32.xlu0 %v563, 1
  %v631 = vpop.permute.xlu0 %630
  %632 = vrot.lane.b32.xlu0 %v564, 1
  %v633 = vpop.permute.xlu0 %632
  %634 = vrot.lane.b32.xlu0 %v565, 1
  %v635 = vpop.permute.xlu0 %634
  %v636 = vsel %vm194, %v633, %v635
  %v637 = vsel %vm194, %v631, %v633
  %v638 = vsel %vm194, %v629, %v631
  %v639 = vsel %vm194, %v635, %v629
  %v640 = vmul.f32 %v639, %v202
  %v641 = vmul.f32 %v638, %v206
  %v642 = vmul.f32 %v637, %v210
  %v643 = vmul.f32 %v636, %v214
  %644 = vst [vmem:[#allocation2 + $0x60] sm:$0xff] %v640
  %645 = vst [vmem:[#allocation2 + $0x68] sm:$0xff] %v641
  %646 = vst [vmem:[#allocation2 + $0x70] sm:$0xff] %v642
  %647 = vst [vmem:[#allocation2 + $0x78] sm:$0xff] %v643
  %648 = vst [vmem:[#allocation2 + $0x80] sm:$0xff] %v562
  %649 = vst [vmem:[#allocation2 + $0x88] sm:$0xff] %v563
  %650 = vst [vmem:[#allocation2 + $0x90] sm:$0xff] %v564
  %651 = vst [vmem:[#allocation2 + $0x98] sm:$0xff] %v565
  %652 = vrot.lane.b32.xlu0 %v562, 127
  %v653 = vpop.permute.xlu0 %652
  %654 = vrot.lane.b32.xlu0 %v563, 127
  %v655 = vpop.permute.xlu0 %654
  %656 = vrot.lane.b32.xlu0 %v564, 127
  %v657 = vpop.permute.xlu0 %656
  %658 = vrot.lane.b32.xlu0 %v565, 127
  %v659 = vpop.permute.xlu0 %658
  %v660 = vsel %vm235, %v657, %v659
  %v661 = vsel %vm235, %v655, %v657
  %v662 = vsel %vm235, %v653, %v655
  %v663 = vsel %vm235, %v659, %v653
  %v664 = vmul.f32 %v662, %v243
  %v665 = vmul.f32 %v661, %v247
  %v666 = vmul.f32 %v660, %v251
  %v667 = vmul.f32 %v663, %v255
  %668 = vst [vmem:[#allocation2 + $0xa0] sm:$0xff] %v664
  %669 = vst [vmem:[#allocation2 + $0xa8] sm:$0xff] %v665
  %670 = vst [vmem:[#allocation2 + $0xb0] sm:$0xff] %v666
  %671 = vst [vmem:[#allocation2 + $0xb8] sm:$0xff] %v667
  %672 = vrot.lane.b32.xlu0 %v562, 113
  %v673 = vpop.permute.xlu0 %672
  %674 = vrot.lane.b32.xlu0 %v563, 113
  %v675 = vpop.permute.xlu0 %674
  %676 = vrot.lane.b32.xlu0 %v564, 113
  %v677 = vpop.permute.xlu0 %676
  %678 = vrot.lane.b32.xlu0 %v565, 113
  %v679 = vpop.permute.xlu0 %678
  %v680 = vsel %vm272, %v677, %v679
  %v681 = vsel %vm272, %v675, %v677
  %v682 = vsel %vm272, %v673, %v675
  %v683 = vsel %vm272, %v679, %v673
  %v684 = vmul.f32 %v682, %v280
  %v685 = vmul.f32 %v681, %v284
  %v686 = vmul.f32 %v680, %v288
  %v687 = vmul.f32 %v683, %v292
  %688 = vst [vmem:[#allocation2 + $0xc0] sm:$0xff] %v684
  %689 = vst [vmem:[#allocation2 + $0xc8] sm:$0xff] %v685
  %690 = vst [vmem:[#allocation2 + $0xd0] sm:$0xff] %v686
  %691 = vst [vmem:[#allocation2 + $0xd8] sm:$0xff] %v687
  %692 = vrot.lane.b32.xlu0 %v562, 112
  %v693 = vpop.permute.xlu0 %692
  %694 = vrot.lane.b32.xlu0 %v563, 112
  %v695 = vpop.permute.xlu0 %694
  %696 = vrot.lane.b32.xlu0 %v564, 112
  %v697 = vpop.permute.xlu0 %696
  %698 = vrot.lane.b32.xlu0 %v565, 112
  %v699 = vpop.permute.xlu0 %698
  %v700 = vsel %vm309, %v697, %v699
  %v701 = vsel %vm309, %v695, %v697
  %v702 = vsel %vm309, %v693, %v695
  %v703 = vsel %vm309, %v699, %v693
  %v704 = vmul.f32 %v702, %v317
  %v705 = vmul.f32 %v701, %v321
  %v706 = vmul.f32 %v700, %v325
  %v707 = vmul.f32 %v703, %v329
  %708 = vst [vmem:[#allocation2 + $0xe0] sm:$0xff] %v704
  %709 = vst [vmem:[#allocation2 + $0xe8] sm:$0xff] %v705
  %710 = vst [vmem:[#allocation2 + $0xf0] sm:$0xff] %v706
  %711 = vst [vmem:[#allocation2 + $0xf8] sm:$0xff] %v707
  %712 = vrot.lane.b32.xlu0 %v562, 111
  %v713 = vpop.permute.xlu0 %712
  %714 = vrot.lane.b32.xlu0 %v563, 111
  %v715 = vpop.permute.xlu0 %714
  %716 = vrot.lane.b32.xlu0 %v564, 111
  %v717 = vpop.permute.xlu0 %716
  %718 = vrot.lane.b32.xlu0 %v565, 111
  %v719 = vpop.permute.xlu0 %718
  %v720 = vsel %vm346, %v717, %v719
  %v721 = vsel %vm346, %v715, %v717
  %v722 = vsel %vm346, %v713, %v715
  %v723 = vsel %vm346, %v719, %v713
  %v724 = vmul.f32 %v722, %v354
  %v725 = vmul.f32 %v721, %v358
  %v726 = vmul.f32 %v720, %v362
  %v727 = vmul.f32 %v723, %v366
  %728 = vst [vmem:[#allocation2 + $0x100] sm:$0xff] %v724
  %729 = vst [vmem:[#allocation2 + $0x108] sm:$0xff] %v725
  %730 = vst [vmem:[#allocation2 + $0x110] sm:$0xff] %v726
  %731 = vst [vmem:[#allocation2 + $0x118] sm:$0xff] %v727
  %v732 = vld [vmem:[#allocation2] sm:$0xff]
  %v733 = vld [vmem:[#allocation2 + $0x8] sm:$0xff]
  %v734 = vld [vmem:[#allocation2 + $0x10] sm:$0xff]
  %v735 = vld [vmem:[#allocation2 + $0x18] sm:$0xff]
  %v736 = vld [vmem:[#allocation2 + $0x20] sm:$0xff]
  %v737 = vld [vmem:[#allocation2 + $0x28] sm:$0xff]
  %v738 = vld [vmem:[#allocation2 + $0x30] sm:$0xff]
  %v739 = vld [vmem:[#allocation2 + $0x38] sm:$0xff]
  %v740 = vld [vmem:[#allocation2 + $0x40] sm:$0xff]
  %v741 = vld [vmem:[#allocation2 + $0x48] sm:$0xff]
  %v742 = vld [vmem:[#allocation2 + $0x50] sm:$0xff]
  %v743 = vld [vmem:[#allocation2 + $0x58] sm:$0xff]
  %v744 = vld [vmem:[#allocation2 + $0x60] sm:$0xff]
  %v745 = vld [vmem:[#allocation2 + $0x68] sm:$0xff]
  %v746 = vld [vmem:[#allocation2 + $0x70] sm:$0xff]
  %v747 = vld [vmem:[#allocation2 + $0x78] sm:$0xff]
  %v748 = vld [vmem:[#allocation2 + $0x80] sm:$0xff]
  %v749 = vld [vmem:[#allocation2 + $0x88] sm:$0xff]
  %v750 = vld [vmem:[#allocation2 + $0x90] sm:$0xff]
  %v751 = vld [vmem:[#allocation2 + $0x98] sm:$0xff]
  %v752 = vld [vmem:[#allocation2 + $0xa0] sm:$0xff]
  %v753 = vld [vmem:[#allocation2 + $0xa8] sm:$0xff]
  %v754 = vld [vmem:[#allocation2 + $0xb0] sm:$0xff]
  %v755 = vld [vmem:[#allocation2 + $0xb8] sm:$0xff]
  %v756 = vld [vmem:[#allocation2 + $0xc0] sm:$0xff]
  %v757 = vld [vmem:[#allocation2 + $0xc8] sm:$0xff]
  %v758 = vld [vmem:[#allocation2 + $0xd0] sm:$0xff]
  %v759 = vld [vmem:[#allocation2 + $0xd8] sm:$0xff]
  %v760 = vld [vmem:[#allocation2 + $0xe0] sm:$0xff]
  %v761 = vld [vmem:[#allocation2 + $0xe8] sm:$0xff]
  %v762 = vld [vmem:[#allocation2 + $0xf0] sm:$0xff]
  %v763 = vld [vmem:[#allocation2 + $0xf8] sm:$0xff]
  %v764 = vld [vmem:[#allocation2 + $0x100] sm:$0xff]
  %v765 = vld [vmem:[#allocation2 + $0x108] sm:$0xff]
  %v766 = vld [vmem:[#allocation2 + $0x110] sm:$0xff]
  %v767 = vld [vmem:[#allocation2 + $0x118] sm:$0xff]
  %769 = vset.pattern.permute.xlu0 0
  %770 = vperm.xlu0 %769, %v567
  %v771 = vpop.permute.xlu0 %770
  %v774 = vsel %vm416, %v566, 0
  %776 = vmatprep.subr.mxu0 0.0
  %777 = vmatpush1.msra.mxu0 0.0
  %778 = vmatprep.subr.mxu0 0.0
  %779 = vmatpush1.msra.mxu0 0.0
  %780 = vmatprep.subr.mxu0 0.0
  %781 = vmatpush1.msra.mxu0 0.0
  %782 = vmatprep.subr.mxu0 0.0
  %783 = vmatpush1.msra.mxu0 0.0
  %784 = vmatprep.subr.mxu0 0.0
  %785 = vmatpush1.msra.mxu0 0.0
  %786 = vmatprep.subr.mxu0 0.0
  %787 = vmatpush1.msra.mxu0 0.0
  %788 = vmatprep.subr.mxu0 0.0
  %789 = vmatpush1.msra.mxu0 0.0
  %790 = vmatprep.subr.mxu0 %v765
  %791 = vmatpush1.msra.mxu0 %v764
  %792 = vmatprep.subr.mxu0 %v761
  %793 = vmatpush1.msra.mxu0 %v760
  %794 = vmatprep.subr.mxu0 %v757
  %795 = vmatpush1.msra.mxu0 %v756
  %796 = vmatprep.subr.mxu0 %v753
  %797 = vmatpush1.msra.mxu0 %v752
  %798 = vmatprep.subr.mxu0 %v749
  %799 = vmatpush1.msra.mxu0 %v748
  %800 = vmatprep.subr.mxu0 %v745
  %801 = vmatpush1.msra.mxu0 %v744
  %802 = vmatprep.subr.mxu0 %v741
  %803 = vmatpush1.msra.mxu0 %v740
  %804 = vmatprep.subr.mxu0 %v737
  %805 = vmatpush1.msra.mxu0 %v736
  %806 = vmatprep.subr.mxu0 %v733
  %807 = vmatpush1.msra.mxu0 %v732
  %808 = vmatprep.subr.mxu0 0.0
  %809 = vmatpush2.msra.mxu0 0.0
  %810 = vmatprep.subr.mxu0 0.0
  %811 = vmatpush2.msra.mxu0 0.0
  %812 = vmatprep.subr.mxu0 0.0
  %813 = vmatpush2.msra.mxu0 0.0
  %814 = vmatprep.subr.mxu0 0.0
  %815 = vmatpush2.msra.mxu0 0.0
  %816 = vmatprep.subr.mxu0 0.0
  %817 = vmatpush2.msra.mxu0 0.0
  %818 = vmatprep.subr.mxu0 0.0
  %819 = vmatpush2.msra.mxu0 0.0
  %820 = vmatprep.subr.mxu0 0.0
  %821 = vmatpush2.msra.mxu0 0.0
  %822 = vmatprep.subr.mxu0 0.0
  %823 = vmatpush2.msra.mxu0 0.0
  %824 = vmatprep.subr.mxu0 0.0
  %825 = vmatpush2.msra.mxu0 0.0
  %826 = vmatprep.subr.mxu0 0.0
  %827 = vmatpush2.msra.mxu0 0.0
  %828 = vmatprep.subr.mxu0 0.0
  %829 = vmatpush2.msra.mxu0 0.0
  %830 = vmatprep.subr.mxu0 0.0
  %831 = vmatpush2.msra.mxu0 0.0
  %832 = vmatprep.subr.mxu0 0.0
  %833 = vmatpush2.msra.mxu0 0.0
  %834 = vmatprep.subr.mxu0 0.0
  %835 = vmatpush2.msra.mxu0 0.0
  %836 = vmatprep.subr.mxu0 0.0
  %837 = vmatpush2.msra.mxu0 0.0
  %838 = vmatprep.subr.mxu0 0.0
  %839 = vmatpush2.msra.mxu0 0.0
  %840 = vmatprep.mubr.f32.mxu0 0.0
  %841 = vmatmul.mubr.f32.gmra.mxu0 %v774
  %v842 = vpop.f32.mrf.mxu0
  %v843 = vadd.f32 %v771, %v842
  %v844 = vpop.f32.mrf.mxu0
  %v845 = vadd.f32 %v771, %v844
  %846 = vdwg.mxu0
  %847 = vmatprep.subr.mxu0 0.0
  %848 = vmatpush1.msra.mxu0 0.0
  %849 = vmatprep.subr.mxu0 0.0
  %850 = vmatpush1.msra.mxu0 0.0
  %851 = vmatprep.subr.mxu0 0.0
  %852 = vmatpush1.msra.mxu0 0.0
  %853 = vmatprep.subr.mxu0 0.0
  %854 = vmatpush1.msra.mxu0 0.0
  %855 = vmatprep.subr.mxu0 0.0
  %856 = vmatpush1.msra.mxu0 0.0
  %857 = vmatprep.subr.mxu0 0.0
  %858 = vmatpush1.msra.mxu0 0.0
  %859 = vmatprep.subr.mxu0 0.0
  %860 = vmatpush1.msra.mxu0 0.0
  %861 = vmatprep.subr.mxu0 %v767
  %862 = vmatpush1.msra.mxu0 %v766
  %863 = vmatprep.subr.mxu0 %v763
  %864 = vmatpush1.msra.mxu0 %v762
  %865 = vmatprep.subr.mxu0 %v759
  %866 = vmatpush1.msra.mxu0 %v758
  %867 = vmatprep.subr.mxu0 %v755
  %868 = vmatpush1.msra.mxu0 %v754
  %869 = vmatprep.subr.mxu0 %v751
  %870 = vmatpush1.msra.mxu0 %v750
  %871 = vmatprep.subr.mxu0 %v747
  %872 = vmatpush1.msra.mxu0 %v746
  %873 = vmatprep.subr.mxu0 %v743
  %874 = vmatpush1.msra.mxu0 %v742
  %875 = vmatprep.subr.mxu0 %v739
  %876 = vmatpush1.msra.mxu0 %v738
  %877 = vmatprep.subr.mxu0 %v735
  %878 = vmatpush1.msra.mxu0 %v734
  %879 = vmatprep.subr.mxu0 0.0
  %880 = vmatpush2.msra.mxu0 0.0
  %881 = vmatprep.subr.mxu0 0.0
  %882 = vmatpush2.msra.mxu0 0.0
  %883 = vmatprep.subr.mxu0 0.0
  %884 = vmatpush2.msra.mxu0 0.0
  %885 = vmatprep.subr.mxu0 0.0
  %886 = vmatpush2.msra.mxu0 0.0
  %887 = vmatprep.subr.mxu0 0.0
  %888 = vmatpush2.msra.mxu0 0.0
  %889 = vmatprep.subr.mxu0 0.0
  %890 = vmatpush2.msra.mxu0 0.0
  %891 = vmatprep.subr.mxu0 0.0
  %892 = vmatpush2.msra.mxu0 0.0
  %893 = vmatprep.subr.mxu0 0.0
  %894 = vmatpush2.msra.mxu0 0.0
  %895 = vmatprep.subr.mxu0 0.0
  %896 = vmatpush2.msra.mxu0 0.0
  %897 = vmatprep.subr.mxu0 0.0
  %898 = vmatpush2.msra.mxu0 0.0
  %899 = vmatprep.subr.mxu0 0.0
  %900 = vmatpush2.msra.mxu0 0.0
  %901 = vmatprep.subr.mxu0 0.0
  %902 = vmatpush2.msra.mxu0 0.0
  %903 = vmatprep.subr.mxu0 0.0
  %904 = vmatpush2.msra.mxu0 0.0
  %905 = vmatprep.subr.mxu0 0.0
  %906 = vmatpush2.msra.mxu0 0.0
  %907 = vmatprep.subr.mxu0 0.0
  %908 = vmatpush2.msra.mxu0 0.0
  %909 = vmatprep.subr.mxu0 0.0
  %910 = vmatpush2.msra.mxu0 0.0
  %911 = vmatprep.mubr.f32.mxu0 0.0
  %912 = vmatmul.mubr.f32.gmra.mxu0 %v774
  %v913 = vpop.f32.mrf.mxu0
  %v914 = vadd.f32 %v771, %v913
  %v915 = vpop.f32.mrf.mxu0
  %v916 = vadd.f32 %v771, %v915
  %917 = vdwg.mxu0
  %v918 = vadd.f32 %v843, %v61
  %v919 = vadd.f32 %v845, %v62
  %v920 = vadd.f32 %v914, %v63
  %v921 = vadd.f32 %v916, %v64
  %v922 = vmax.f32 %v918, 0.0
  %v923 = vmax.f32 %v919, 0.0
  %v924 = vmax.f32 %v920, 0.0
  %v925 = vmax.f32 %v921, 0.0
  %v926 = vld [vmem:[%s6] sm:$0xff]
  %v927 = vld [vmem:[%s7] sm:$0xff]
  %928 = vrot.lane.b32.xlu0 %v65, 9
  %v929 = vpop.permute.xlu0 %928
  %v930 = vlaneseq
  %v931 = vshrl.u32 %v930, 7
  %v932 = vsub.s32 0, %v931
  %v933 = vrot.slane %v70, %v932
  %v934 = vmul.f32 %v929, %v933
  %935 = vst [vmem:[#allocation3] sm:$0xff] %v934
  %936 = vrot.lane.b32.xlu0 %v65, 8
  %v937 = vpop.permute.xlu0 %936
  %v938 = vlaneseq
  %v939 = vshrl.u32 %v938, 7
  %v940 = vsub.s32 1, %v939
  %v941 = vrot.slane %v70, %v940
  %v942 = vmul.f32 %v937, %v941
  %943 = vst [vmem:[#allocation3 + $0x8] sm:$0xff] %v942
  %944 = vrot.lane.b32.xlu0 %v65, 7
  %v945 = vpop.permute.xlu0 %944
  %v946 = vlaneseq
  %v947 = vshrl.u32 %v946, 7
  %v948 = vsub.s32 2, %v947
  %v949 = vrot.slane %v70, %v948
  %v950 = vmul.f32 %v945, %v949
  %951 = vst [vmem:[#allocation3 + $0x10] sm:$0xff] %v950
  %952 = vrot.lane.b32.xlu0 %v65, 1
  %v953 = vpop.permute.xlu0 %952
  %v954 = vlaneseq
  %v955 = vshrl.u32 %v954, 7
  %v956 = vsub.s32 3, %v955
  %v957 = vrot.slane %v70, %v956
  %v958 = vmul.f32 %v953, %v957
  %959 = vst [vmem:[#allocation3 + $0x18] sm:$0xff] %v958
  %960 = vst [vmem:[#allocation3 + $0x20] sm:$0xff] %v65
  %961 = vrot.lane.b32.xlu0 %v65, 127
  %v962 = vpop.permute.xlu0 %961
  %v963 = vlaneseq
  %v964 = vshrl.u32 %v963, 7
  %v965 = vsub.s32 4, %v964
  %v966 = vrot.slane %v70, %v965
  %v967 = vmul.f32 %v962, %v966
  %968 = vst [vmem:[#allocation3 + $0x28] sm:$0xff] %v967
  %969 = vrot.lane.b32.xlu0 %v65, 121
  %v970 = vpop.permute.xlu0 %969
  %v971 = vlaneseq
  %v972 = vshrl.u32 %v971, 7
  %v973 = vsub.s32 5, %v972
  %v974 = vrot.slane %v70, %v973
  %v975 = vmul.f32 %v970, %v974
  %976 = vst [vmem:[#allocation3 + $0x30] sm:$0xff] %v975
  %977 = vrot.lane.b32.xlu0 %v65, 120
  %v978 = vpop.permute.xlu0 %977
  %v979 = vlaneseq
  %v980 = vshrl.u32 %v979, 7
  %v981 = vsub.s32 6, %v980
  %v982 = vrot.slane %v70, %v981
  %v983 = vmul.f32 %v978, %v982
  %984 = vst [vmem:[#allocation3 + $0x38] sm:$0xff] %v983
  %985 = vrot.lane.b32.xlu0 %v65, 119
  %v986 = vpop.permute.xlu0 %985
  %v987 = vlaneseq
  %v988 = vshrl.u32 %v987, 7
  %v989 = vsub.s32 7, %v988
  %v990 = vrot.slane %v70, %v989
  %v991 = vmul.f32 %v986, %v990
  %992 = vst [vmem:[#allocation3 + $0x40] sm:$0xff] %v991
  %v993 = vld [vmem:[#allocation3] sm:$0xff]
  %v994 = vld [vmem:[#allocation3 + $0x8] sm:$0xff]
  %v995 = vld [vmem:[#allocation3 + $0x10] sm:$0xff]
  %v996 = vld [vmem:[#allocation3 + $0x18] sm:$0xff]
  %v997 = vld [vmem:[#allocation3 + $0x20] sm:$0xff]
  %v998 = vld [vmem:[#allocation3 + $0x28] sm:$0xff]
  %v999 = vld [vmem:[#allocation3 + $0x30] sm:$0xff]
  %v1000 = vld [vmem:[#allocation3 + $0x38] sm:$0xff]
  %v1001 = vld [vmem:[#allocation3 + $0x40] sm:$0xff]
  %1003 = vset.pattern.permute.xlu0 0
  %1004 = vperm.xlu0 %1003, %v927
  %v1005 = vpop.permute.xlu0 %1004
  %v1008 = vsel %vm416, %v926, 0
  %1010 = vmatprep.subr.mxu0 0.0
  %1011 = vmatpush1.msra.mxu0 0.0
  %1012 = vmatprep.subr.mxu0 0.0
  %1013 = vmatpush1.msra.mxu0 0.0
  %1014 = vmatprep.subr.mxu0 0.0
  %1015 = vmatpush1.msra.mxu0 0.0
  %1016 = vmatprep.subr.mxu0 0.0
  %1017 = vmatpush1.msra.mxu0 0.0
  %1018 = vmatprep.subr.mxu0 0.0
  %1019 = vmatpush1.msra.mxu0 0.0
  %1020 = vmatprep.subr.mxu0 0.0
  %1021 = vmatpush1.msra.mxu0 0.0
  %1022 = vmatprep.subr.mxu0 0.0
  %1023 = vmatpush1.msra.mxu0 0.0
  %1024 = vmatprep.subr.mxu0 0.0
  %1025 = vmatpush1.msra.mxu0 %v1001
  %1026 = vmatprep.subr.mxu0 0.0
  %1027 = vmatpush1.msra.mxu0 %v1000
  %1028 = vmatprep.subr.mxu0 0.0
  %1029 = vmatpush1.msra.mxu0 %v999
  %1030 = vmatprep.subr.mxu0 0.0
  %1031 = vmatpush1.msra.mxu0 %v998
  %1032 = vmatprep.subr.mxu0 0.0
  %1033 = vmatpush1.msra.mxu0 %v997
  %1034 = vmatprep.subr.mxu0 0.0
  %1035 = vmatpush1.msra.mxu0 %v996
  %1036 = vmatprep.subr.mxu0 0.0
  %1037 = vmatpush1.msra.mxu0 %v995
  %1038 = vmatprep.subr.mxu0 0.0
  %1039 = vmatpush1.msra.mxu0 %v994
  %1040 = vmatprep.subr.mxu0 0.0
  %1041 = vmatpush1.msra.mxu0 %v993
  %1042 = vmatprep.subr.mxu0 0.0
  %1043 = vmatpush2.msra.mxu0 0.0
  %1044 = vmatprep.subr.mxu0 0.0
  %1045 = vmatpush2.msra.mxu0 0.0
  %1046 = vmatprep.subr.mxu0 0.0
  %1047 = vmatpush2.msra.mxu0 0.0
  %1048 = vmatprep.subr.mxu0 0.0
  %1049 = vmatpush2.msra.mxu0 0.0
  %1050 = vmatprep.subr.mxu0 0.0
  %1051 = vmatpush2.msra.mxu0 0.0
  %1052 = vmatprep.subr.mxu0 0.0
  %1053 = vmatpush2.msra.mxu0 0.0
  %1054 = vmatprep.subr.mxu0 0.0
  %1055 = vmatpush2.msra.mxu0 0.0
  %1056 = vmatprep.subr.mxu0 0.0
  %1057 = vmatpush2.msra.mxu0 0.0
  %1058 = vmatprep.subr.mxu0 0.0
  %1059 = vmatpush2.msra.mxu0 0.0
  %1060 = vmatprep.subr.mxu0 0.0
  %1061 = vmatpush2.msra.mxu0 0.0
  %1062 = vmatprep.subr.mxu0 0.0
  %1063 = vmatpush2.msra.mxu0 0.0
  %1064 = vmatprep.subr.mxu0 0.0
  %1065 = vmatpush2.msra.mxu0 0.0
  %1066 = vmatprep.subr.mxu0 0.0
  %1067 = vmatpush2.msra.mxu0 0.0
  %1068 = vmatprep.subr.mxu0 0.0
  %1069 = vmatpush2.msra.mxu0 0.0
  %1070 = vmatprep.subr.mxu0 0.0
  %1071 = vmatpush2.msra.mxu0 0.0
  %1072 = vmatprep.subr.mxu0 0.0
  %1073 = vmatpush2.msra.mxu0 0.0
  %1074 = vmatprep.mubr.f32.mxu0 0.0
  %1075 = vmatmul.mubr.f32.gmra.mxu0 %v1008
  %v1076 = vpop.f32.mrf.mxu0
  %v1077 = vadd.f32 %v1005, %v1076
  %v1078 = vpop.f32.mrf.mxu0
  %1079 = vdwg.mxu0
  %v1080 = vmax.f32 %v1077, 0.0
  %v1081 = vld [vmem:[%s8] sm:$0xff]
  %v1082 = vld [vmem:[%s9] sm:$0xff]
  %1083 = vrot.lane.b32.xlu0 %v1080, 9
  %v1084 = vpop.permute.xlu0 %1083
  %v1085 = vmul.f32 %v1084, %v933
  %1086 = vst [vmem:[#allocation3] sm:$0xff] %v1085
  %1087 = vrot.lane.b32.xlu0 %v1080, 8
  %v1088 = vpop.permute.xlu0 %1087
  %v1089 = vmul.f32 %v1088, %v941
  %1090 = vst [vmem:[#allocation3 + $0x8] sm:$0xff] %v1089
  %1091 = vrot.lane.b32.xlu0 %v1080, 7
  %v1092 = vpop.permute.xlu0 %1091
  %v1093 = vmul.f32 %v1092, %v949
  %1094 = vst [vmem:[#allocation3 + $0x10] sm:$0xff] %v1093
  %1095 = vrot.lane.b32.xlu0 %v1080, 1
  %v1096 = vpop.permute.xlu0 %1095
  %v1097 = vmul.f32 %v1096, %v957
  %1098 = vst [vmem:[#allocation3 + $0x18] sm:$0xff] %v1097
  %1099 = vst [vmem:[#allocation3 + $0x20] sm:$0xff] %v1080
  %1100 = vrot.lane.b32.xlu0 %v1080, 127
  %v1101 = vpop.permute.xlu0 %1100
  %v1102 = vmul.f32 %v1101, %v966
  %1103 = vst [vmem:[#allocation3 + $0x28] sm:$0xff] %v1102
  %1104 = vrot.lane.b32.xlu0 %v1080, 121
  %v1105 = vpop.permute.xlu0 %1104
  %v1106 = vmul.f32 %v1105, %v974
  %1107 = vst [vmem:[#allocation3 + $0x30] sm:$0xff] %v1106
  %1108 = vrot.lane.b32.xlu0 %v1080, 120
  %v1109 = vpop.permute.xlu0 %1108
  %v1110 = vmul.f32 %v1109, %v982
  %1111 = vst [vmem:[#allocation3 + $0x38] sm:$0xff] %v1110
  %1112 = vrot.lane.b32.xlu0 %v1080, 119
  %v1113 = vpop.permute.xlu0 %1112
  %v1114 = vmul.f32 %v1113, %v990
  %1115 = vst [vmem:[#allocation3 + $0x40] sm:$0xff] %v1114
  %v1116 = vld [vmem:[#allocation3] sm:$0xff]
  %v1117 = vld [vmem:[#allocation3 + $0x8] sm:$0xff]
  %v1118 = vld [vmem:[#allocation3 + $0x10] sm:$0xff]
  %v1119 = vld [vmem:[#allocation3 + $0x18] sm:$0xff]
  %v1120 = vld [vmem:[#allocation3 + $0x20] sm:$0xff]
  %v1121 = vld [vmem:[#allocation3 + $0x28] sm:$0xff]
  %v1122 = vld [vmem:[#allocation3 + $0x30] sm:$0xff]
  %v1123 = vld [vmem:[#allocation3 + $0x38] sm:$0xff]
  %v1124 = vld [vmem:[#allocation3 + $0x40] sm:$0xff]
  %1126 = vset.pattern.permute.xlu0 0
  %1127 = vperm.xlu0 %1126, %v1082
  %v1128 = vpop.permute.xlu0 %1127
  %v1131 = vsel %vm416, %v1081, 0
  %1133 = vmatprep.subr.mxu0 0.0
  %1134 = vmatpush1.msra.mxu0 0.0
  %1135 = vmatprep.subr.mxu0 0.0
  %1136 = vmatpush1.msra.mxu0 0.0
  %1137 = vmatprep.subr.mxu0 0.0
  %1138 = vmatpush1.msra.mxu0 0.0
  %1139 = vmatprep.subr.mxu0 0.0
  %1140 = vmatpush1.msra.mxu0 0.0
  %1141 = vmatprep.subr.mxu0 0.0
  %1142 = vmatpush1.msra.mxu0 0.0
  %1143 = vmatprep.subr.mxu0 0.0
  %1144 = vmatpush1.msra.mxu0 0.0
  %1145 = vmatprep.subr.mxu0 0.0
  %1146 = vmatpush1.msra.mxu0 0.0
  %1147 = vmatprep.subr.mxu0 0.0
  %1148 = vmatpush1.msra.mxu0 %v1124
  %1149 = vmatprep.subr.mxu0 0.0
  %1150 = vmatpush1.msra.mxu0 %v1123
  %1151 = vmatprep.subr.mxu0 0.0
  %1152 = vmatpush1.msra.mxu0 %v1122
  %1153 = vmatprep.subr.mxu0 0.0
  %1154 = vmatpush1.msra.mxu0 %v1121
  %1155 = vmatprep.subr.mxu0 0.0
  %1156 = vmatpush1.msra.mxu0 %v1120
  %1157 = vmatprep.subr.mxu0 0.0
  %1158 = vmatpush1.msra.mxu0 %v1119
  %1159 = vmatprep.subr.mxu0 0.0
  %1160 = vmatpush1.msra.mxu0 %v1118
  %1161 = vmatprep.subr.mxu0 0.0
  %1162 = vmatpush1.msra.mxu0 %v1117
  %1163 = vmatprep.subr.mxu0 0.0
  %1164 = vmatpush1.msra.mxu0 %v1116
  %1165 = vmatprep.subr.mxu0 0.0
  %1166 = vmatpush2.msra.mxu0 0.0
  %1167 = vmatprep.subr.mxu0 0.0
  %1168 = vmatpush2.msra.mxu0 0.0
  %1169 = vmatprep.subr.mxu0 0.0
  %1170 = vmatpush2.msra.mxu0 0.0
  %1171 = vmatprep.subr.mxu0 0.0
  %1172 = vmatpush2.msra.mxu0 0.0
  %1173 = vmatprep.subr.mxu0 0.0
  %1174 = vmatpush2.msra.mxu0 0.0
  %1175 = vmatprep.subr.mxu0 0.0
  %1176 = vmatpush2.msra.mxu0 0.0
  %1177 = vmatprep.subr.mxu0 0.0
  %1178 = vmatpush2.msra.mxu0 0.0
  %1179 = vmatprep.subr.mxu0 0.0
  %1180 = vmatpush2.msra.mxu0 0.0
  %1181 = vmatprep.subr.mxu0 0.0
  %1182 = vmatpush2.msra.mxu0 0.0
  %1183 = vmatprep.subr.mxu0 0.0
  %1184 = vmatpush2.msra.mxu0 0.0
  %1185 = vmatprep.subr.mxu0 0.0
  %1186 = vmatpush2.msra.mxu0 0.0
  %1187 = vmatprep.subr.mxu0 0.0
  %1188 = vmatpush2.msra.mxu0 0.0
  %1189 = vmatprep.subr.mxu0 0.0
  %1190 = vmatpush2.msra.mxu0 0.0
  %1191 = vmatprep.subr.mxu0 0.0
  %1192 = vmatpush2.msra.mxu0 0.0
  %1193 = vmatprep.subr.mxu0 0.0
  %1194 = vmatpush2.msra.mxu0 0.0
  %1195 = vmatprep.subr.mxu0 0.0
  %1196 = vmatpush2.msra.mxu0 0.0
  %1197 = vmatprep.mubr.f32.mxu0 0.0
  %1198 = vmatmul.mubr.f32.gmra.mxu0 %v1131
  %v1199 = vpop.f32.mrf.mxu0
  %v1200 = vadd.f32 %v1128, %v1199
  %v1201 = vpop.f32.mrf.mxu0
  %1202 = vdwg.mxu0
  %v1203 = vadd.f32 %v1200, %v65
  %v1204 = vmax.f32 %v1203, 0.0
  %v1205 = vld [vmem:[%s10] sm:$0xff]
  %v1206 = vld [vmem:[%s11] sm:$0xff]
  %1208 = vset.pattern.permute.xlu0 0
  %1209 = vperm.xlu0 %1208, %v1206
  %v1210 = vpop.permute.xlu0 %1209
  %vm1212 = vcmask 64512
  %v1214 = vsel %vm1212, %v1205, 0
  %1216 = vmatprep.subr.mxu0 0.0
  %1217 = vmatpush1.msra.mxu0 0.0
  %1218 = vmatprep.subr.mxu0 0.0
  %1219 = vmatpush1.msra.mxu0 0.0
  %1220 = vmatprep.subr.mxu0 0.0
  %1221 = vmatpush1.msra.mxu0 0.0
  %1222 = vmatprep.subr.mxu0 0.0
  %1223 = vmatpush1.msra.mxu0 0.0
  %1224 = vmatprep.subr.mxu0 0.0
  %1225 = vmatpush1.msra.mxu0 0.0
  %1226 = vmatprep.subr.mxu0 0.0
  %1227 = vmatpush1.msra.mxu0 0.0
  %1228 = vmatprep.subr.mxu0 0.0
  %1229 = vmatpush1.msra.mxu0 0.0
  %1230 = vmatprep.subr.mxu0 0.0
  %1231 = vmatpush1.msra.mxu0 0.0
  %1232 = vmatprep.subr.mxu0 0.0
  %1233 = vmatpush1.msra.mxu0 0.0
  %1234 = vmatprep.subr.mxu0 0.0
  %1235 = vmatpush1.msra.mxu0 0.0
  %1236 = vmatprep.subr.mxu0 0.0
  %1237 = vmatpush1.msra.mxu0 0.0
  %1238 = vmatprep.subr.mxu0 0.0
  %1239 = vmatpush1.msra.mxu0 0.0
  %1240 = vmatprep.subr.mxu0 0.0
  %1241 = vmatpush1.msra.mxu0 0.0
  %1242 = vmatprep.subr.mxu0 0.0
  %1243 = vmatpush1.msra.mxu0 0.0
  %1244 = vmatprep.subr.mxu0 0.0
  %1245 = vmatpush1.msra.mxu0 0.0
  %1246 = vmatprep.subr.mxu0 0.0
  %1247 = vmatpush1.msra.mxu0 %v1204
  %1248 = vmatprep.subr.mxu0 0.0
  %1249 = vmatpush2.msra.mxu0 0.0
  %1250 = vmatprep.subr.mxu0 0.0
  %1251 = vmatpush2.msra.mxu0 0.0
  %1252 = vmatprep.subr.mxu0 0.0
  %1253 = vmatpush2.msra.mxu0 0.0
  %1254 = vmatprep.subr.mxu0 0.0
  %1255 = vmatpush2.msra.mxu0 0.0
  %1256 = vmatprep.subr.mxu0 0.0
  %1257 = vmatpush2.msra.mxu0 0.0
  %1258 = vmatprep.subr.mxu0 0.0
  %1259 = vmatpush2.msra.mxu0 0.0
  %1260 = vmatprep.subr.mxu0 0.0
  %1261 = vmatpush2.msra.mxu0 0.0
  %1262 = vmatprep.subr.mxu0 0.0
  %1263 = vmatpush2.msra.mxu0 0.0
  %1264 = vmatprep.subr.mxu0 0.0
  %1265 = vmatpush2.msra.mxu0 0.0
  %1266 = vmatprep.subr.mxu0 0.0
  %1267 = vmatpush2.msra.mxu0 0.0
  %1268 = vmatprep.subr.mxu0 0.0
  %1269 = vmatpush2.msra.mxu0 0.0
  %1270 = vmatprep.subr.mxu0 0.0
  %1271 = vmatpush2.msra.mxu0 0.0
  %1272 = vmatprep.subr.mxu0 0.0
  %1273 = vmatpush2.msra.mxu0 0.0
  %1274 = vmatprep.subr.mxu0 0.0
  %1275 = vmatpush2.msra.mxu0 0.0
  %1276 = vmatprep.subr.mxu0 0.0
  %1277 = vmatpush2.msra.mxu0 0.0
  %1278 = vmatprep.subr.mxu0 0.0
  %1279 = vmatpush2.msra.mxu0 0.0
  %1280 = vmatprep.mubr.f32.mxu0 0.0
  %1281 = vmatmul.mubr.f32.gmra.mxu0 %v1214
  %v1282 = vpop.f32.mrf.mxu0
  %v1283 = vadd.f32 %v1210, %v1282
  %v1284 = vpop.f32.mrf.mxu0
  %1285 = vdwg.mxu0
  %v1286 = vld [vmem:[%s14] sm:$0xff]
  %v1287 = vld [vmem:[%s14 + $0x8] sm:$0xff]
  %v1288 = vld [vmem:[%s14 + $0x10] sm:$0xff]
  %v1289 = vld [vmem:[%s14 + $0x18] sm:$0xff]
  %v1290 = vld [vmem:[%s14 + $0x20] sm:$0xff]
  %v1291 = vld [vmem:[%s14 + $0x28] sm:$0xff]
  %v1292 = vld [vmem:[%s14 + $0x30] sm:$0xff]
  %v1293 = vld [vmem:[%s14 + $0x38] sm:$0xff]
  %v1294 = vld [vmem:[%s14 + $0x40] sm:$0xff]
  %v1295 = vld [vmem:[%s14 + $0x48] sm:$0xff]
  %v1296 = vld [vmem:[%s14 + $0x50] sm:$0xff]
  %v1297 = vld [vmem:[%s14 + $0x58] sm:$0xff]
  %v1298 = vld [vmem:[%s14 + $0x60] sm:$0xff]
  %v1299 = vld [vmem:[%s14 + $0x68] sm:$0xff]
  %v1300 = vld [vmem:[%s14 + $0x70] sm:$0xff]
  %v1301 = vld [vmem:[%s14 + $0x78] sm:$0xff]
  %vm1302 = vcmask 523264
  %v1304 = vsel %vm1302, %v1283, 0
  %1306 = vmatprep.subr.mxu0 0.0
  %1307 = vmatpush1.msra.mxu0 0.0
  %1308 = vmatprep.subr.mxu0 0.0
  %1309 = vmatpush1.msra.mxu0 0.0
  %1310 = vmatprep.subr.mxu0 0.0
  %1311 = vmatpush1.msra.mxu0 0.0
  %1312 = vmatprep.subr.mxu0 0.0
  %1313 = vmatpush1.msra.mxu0 0.0
  %1314 = vmatprep.subr.mxu0 0.0
  %1315 = vmatpush1.msra.mxu0 0.0
  %1316 = vmatprep.subr.mxu0 0.0
  %1317 = vmatpush1.msra.mxu0 0.0
  %1318 = vmatprep.subr.mxu0 0.0
  %1319 = vmatpush1.msra.mxu0 0.0
  %1320 = vmatprep.subr.mxu0 0.0
  %1321 = vmatpush1.msra.mxu0 0.0
  %1322 = vmatprep.subr.mxu0 %v1301
  %1323 = vmatpush1.msra.mxu0 %v1300
  %1324 = vmatprep.subr.mxu0 %v1299
  %1325 = vmatpush1.msra.mxu0 %v1298
  %1326 = vmatprep.subr.mxu0 %v1297
  %1327 = vmatpush1.msra.mxu0 %v1296
  %1328 = vmatprep.subr.mxu0 %v1295
  %1329 = vmatpush1.msra.mxu0 %v1294
  %1330 = vmatprep.subr.mxu0 %v1293
  %1331 = vmatpush1.msra.mxu0 %v1292
  %1332 = vmatprep.subr.mxu0 %v1291
  %1333 = vmatpush1.msra.mxu0 %v1290
  %1334 = vmatprep.subr.mxu0 %v1289
  %1335 = vmatpush1.msra.mxu0 %v1288
  %1336 = vmatprep.subr.mxu0 %v1287
  %1337 = vmatpush1.msra.mxu0 %v1286
  %1338 = vmatprep.subr.mxu0 0.0
  %1339 = vmatpush2.msra.mxu0 0.0
  %1340 = vmatprep.subr.mxu0 0.0
  %1341 = vmatpush2.msra.mxu0 0.0
  %1342 = vmatprep.subr.mxu0 0.0
  %1343 = vmatpush2.msra.mxu0 0.0
  %1344 = vmatprep.subr.mxu0 0.0
  %1345 = vmatpush2.msra.mxu0 0.0
  %1346 = vmatprep.subr.mxu0 0.0
  %1347 = vmatpush2.msra.mxu0 0.0
  %1348 = vmatprep.subr.mxu0 0.0
  %1349 = vmatpush2.msra.mxu0 0.0
  %1350 = vmatprep.subr.mxu0 0.0
  %1351 = vmatpush2.msra.mxu0 0.0
  %1352 = vmatprep.subr.mxu0 0.0
  %1353 = vmatpush2.msra.mxu0 0.0
  %1354 = vmatprep.subr.mxu0 0.0
  %1355 = vmatpush2.msra.mxu0 0.0
  %1356 = vmatprep.subr.mxu0 0.0
  %1357 = vmatpush2.msra.mxu0 0.0
  %1358 = vmatprep.subr.mxu0 0.0
  %1359 = vmatpush2.msra.mxu0 0.0
  %1360 = vmatprep.subr.mxu0 0.0
  %1361 = vmatpush2.msra.mxu0 0.0
  %1362 = vmatprep.subr.mxu0 0.0
  %1363 = vmatpush2.msra.mxu0 0.0
  %1364 = vmatprep.subr.mxu0 0.0
  %1365 = vmatpush2.msra.mxu0 0.0
  %1366 = vmatprep.subr.mxu0 0.0
  %1367 = vmatpush2.msra.mxu0 0.0
  %1368 = vmatprep.subr.mxu0 0.0
  %1369 = vmatpush2.msra.mxu0 0.0
  %1370 = vmatprep.mubr.f32.mxu0 0.0
  %1371 = vmatmul.mubr.f32.gmra.mxu0 %v1304
  %v1372 = vpop.f32.mrf.mxu0
  %v1373 = vadd.f32 0.0, %v1372
  %v1374 = vpop.f32.mrf.mxu0
  %v1375 = vadd.f32 0.0, %v1374
  %1376 = vdwg.mxu0
  %v1377 = vadd.f32 %v922, %v1373
  %v1378 = vadd.f32 %v923, %v1375
  %v1379 = vmax.f32 %v1377, 0.0
  %v1380 = vmax.f32 %v1378, 0.0
  %1381 = vst [vmem:[%s18] sm:$0xff] %v1379
  %1382 = vst [vmem:[%s18 + $0x8] sm:$0xff] %v1380
  %1383 = vrot.lane.b32.xlu0 %v1283, 64
  %v1384 = vpop.permute.xlu0 %1383
  %v1385 = vsel %vm1302, %v1384, 0
  %1387 = vmatprep.subr.mxu0 0.0
  %1388 = vmatpush1.msra.mxu0 0.0
  %1389 = vmatprep.subr.mxu0 0.0
  %1390 = vmatpush1.msra.mxu0 0.0
  %1391 = vmatprep.subr.mxu0 0.0
  %1392 = vmatpush1.msra.mxu0 0.0
  %1393 = vmatprep.subr.mxu0 0.0
  %1394 = vmatpush1.msra.mxu0 0.0
  %1395 = vmatprep.subr.mxu0 0.0
  %1396 = vmatpush1.msra.mxu0 0.0
  %1397 = vmatprep.subr.mxu0 0.0
  %1398 = vmatpush1.msra.mxu0 0.0
  %1399 = vmatprep.subr.mxu0 0.0
  %1400 = vmatpush1.msra.mxu0 0.0
  %1401 = vmatprep.subr.mxu0 0.0
  %1402 = vmatpush1.msra.mxu0 0.0
  %1403 = vmatprep.subr.mxu0 %v1301
  %1404 = vmatpush1.msra.mxu0 %v1300
  %1405 = vmatprep.subr.mxu0 %v1299
  %1406 = vmatpush1.msra.mxu0 %v1298
  %1407 = vmatprep.subr.mxu0 %v1297
  %1408 = vmatpush1.msra.mxu0 %v1296
  %1409 = vmatprep.subr.mxu0 %v1295
  %1410 = vmatpush1.msra.mxu0 %v1294
  %1411 = vmatprep.subr.mxu0 %v1293
  %1412 = vmatpush1.msra.mxu0 %v1292
  %1413 = vmatprep.subr.mxu0 %v1291
  %1414 = vmatpush1.msra.mxu0 %v1290
  %1415 = vmatprep.subr.mxu0 %v1289
  %1416 = vmatpush1.msra.mxu0 %v1288
  %1417 = vmatprep.subr.mxu0 %v1287
  %1418 = vmatpush1.msra.mxu0 %v1286
  %1419 = vmatprep.subr.mxu0 0.0
  %1420 = vmatpush2.msra.mxu0 0.0
  %1421 = vmatprep.subr.mxu0 0.0
  %1422 = vmatpush2.msra.mxu0 0.0
  %1423 = vmatprep.subr.mxu0 0.0
  %1424 = vmatpush2.msra.mxu0 0.0
  %1425 = vmatprep.subr.mxu0 0.0
  %1426 = vmatpush2.msra.mxu0 0.0
  %1427 = vmatprep.subr.mxu0 0.0
  %1428 = vmatpush2.msra.mxu0 0.0
  %1429 = vmatprep.subr.mxu0 0.0
  %1430 = vmatpush2.msra.mxu0 0.0
  %1431 = vmatprep.subr.mxu0 0.0
  %1432 = vmatpush2.msra.mxu0 0.0
  %1433 = vmatprep.subr.mxu0 0.0
  %1434 = vmatpush2.msra.mxu0 0.0
  %1435 = vmatprep.subr.mxu0 0.0
  %1436 = vmatpush2.msra.mxu0 0.0
  %1437 = vmatprep.subr.mxu0 0.0
  %1438 = vmatpush2.msra.mxu0 0.0
  %1439 = vmatprep.subr.mxu0 0.0
  %1440 = vmatpush2.msra.mxu0 0.0
  %1441 = vmatprep.subr.mxu0 0.0
  %1442 = vmatpush2.msra.mxu0 0.0
  %1443 = vmatprep.subr.mxu0 0.0
  %1444 = vmatpush2.msra.mxu0 0.0
  %1445 = vmatprep.subr.mxu0 0.0
  %1446 = vmatpush2.msra.mxu0 0.0
  %1447 = vmatprep.subr.mxu0 0.0
  %1448 = vmatpush2.msra.mxu0 0.0
  %1449 = vmatprep.subr.mxu0 0.0
  %1450 = vmatpush2.msra.mxu0 0.0
  %1451 = vmatprep.mubr.f32.mxu0 0.0
  %1452 = vmatmul.mubr.f32.gmra.mxu0 %v1385
  %v1453 = vpop.f32.mrf.mxu0
  %v1454 = vadd.f32 0.0, %v1453
  %v1455 = vpop.f32.mrf.mxu0
  %v1456 = vadd.f32 0.0, %v1455
  %1457 = vdwg.mxu0
  %v1458 = vadd.f32 %v924, %v1454
  %v1459 = vadd.f32 %v925, %v1456
  %v1460 = vmax.f32 %v1458, 0.0
  %v1461 = vmax.f32 %v1459, 0.0
  %1462 = vst [vmem:[%s18 + $0x10] sm:$0xff] %v1460
  %1463 = vst [vmem:[%s18 + $0x18] sm:$0xff] %v1461
  %1464 = vrot.lane.b32.xlu0 %v922, 17
  %v1465 = vpop.permute.xlu0 %1464
  %1466 = vrot.lane.b32.xlu0 %v923, 17
  %v1467 = vpop.permute.xlu0 %1466
  %1468 = vrot.lane.b32.xlu0 %v924, 17
  %v1469 = vpop.permute.xlu0 %1468
  %1470 = vrot.lane.b32.xlu0 %v925, 17
  %v1471 = vpop.permute.xlu0 %1470
  %v1472 = vsel %vm83, %v1469, %v1471
  %v1473 = vsel %vm83, %v1467, %v1469
  %v1474 = vsel %vm83, %v1465, %v1467
  %v1475 = vsel %vm83, %v1471, %v1465
  %v1476 = vmul.f32 %v1475, %v91
  %v1477 = vmul.f32 %v1474, %v95
  %v1478 = vmul.f32 %v1473, %v99
  %v1479 = vmul.f32 %v1472, %v103
  %1480 = vst [vmem:[#allocation2] sm:$0xff] %v1476
  %1481 = vst [vmem:[#allocation2 + $0x8] sm:$0xff] %v1477
  %1482 = vst [vmem:[#allocation2 + $0x10] sm:$0xff] %v1478
  %1483 = vst [vmem:[#allocation2 + $0x18] sm:$0xff] %v1479
  %1484 = vrot.lane.b32.xlu0 %v922, 16
  %v1485 = vpop.permute.xlu0 %1484
  %1486 = vrot.lane.b32.xlu0 %v923, 16
  %v1487 = vpop.permute.xlu0 %1486
  %1488 = vrot.lane.b32.xlu0 %v924, 16
  %v1489 = vpop.permute.xlu0 %1488
  %1490 = vrot.lane.b32.xlu0 %v925, 16
  %v1491 = vpop.permute.xlu0 %1490
  %v1492 = vsel %vm120, %v1489, %v1491
  %v1493 = vsel %vm120, %v1487, %v1489
  %v1494 = vsel %vm120, %v1485, %v1487
  %v1495 = vsel %vm120, %v1491, %v1485
  %v1496 = vmul.f32 %v1495, %v128
  %v1497 = vmul.f32 %v1494, %v132
  %v1498 = vmul.f32 %v1493, %v136
  %v1499 = vmul.f32 %v1492, %v140
  %1500 = vst [vmem:[#allocation2 + $0x20] sm:$0xff] %v1496
  %1501 = vst [vmem:[#allocation2 + $0x28] sm:$0xff] %v1497
  %1502 = vst [vmem:[#allocation2 + $0x30] sm:$0xff] %v1498
  %1503 = vst [vmem:[#allocation2 + $0x38] sm:$0xff] %v1499
  %1504 = vrot.lane.b32.xlu0 %v922, 15
  %v1505 = vpop.permute.xlu0 %1504
  %1506 = vrot.lane.b32.xlu0 %v923, 15
  %v1507 = vpop.permute.xlu0 %1506
  %1508 = vrot.lane.b32.xlu0 %v924, 15
  %v1509 = vpop.permute.xlu0 %1508
  %1510 = vrot.lane.b32.xlu0 %v925, 15
  %v1511 = vpop.permute.xlu0 %1510
  %v1512 = vsel %vm157, %v1509, %v1511
  %v1513 = vsel %vm157, %v1507, %v1509
  %v1514 = vsel %vm157, %v1505, %v1507
  %v1515 = vsel %vm157, %v1511, %v1505
  %v1516 = vmul.f32 %v1515, %v165
  %v1517 = vmul.f32 %v1514, %v169
  %v1518 = vmul.f32 %v1513, %v173
  %v1519 = vmul.f32 %v1512, %v177
  %1520 = vst [vmem:[#allocation2 + $0x40] sm:$0xff] %v1516
  %1521 = vst [vmem:[#allocation2 + $0x48] sm:$0xff] %v1517
  %1522 = vst [vmem:[#allocation2 + $0x50] sm:$0xff] %v1518
  %1523 = vst [vmem:[#allocation2 + $0x58] sm:$0xff] %v1519
  %1524 = vrot.lane.b32.xlu0 %v922, 1
  %v1525 = vpop.permute.xlu0 %1524
  %1526 = vrot.lane.b32.xlu0 %v923, 1
  %v1527 = vpop.permute.xlu0 %1526
  %1528 = vrot.lane.b32.xlu0 %v924, 1
  %v1529 = vpop.permute.xlu0 %1528
  %1530 = vrot.lane.b32.xlu0 %v925, 1
  %v1531 = vpop.permute.xlu0 %1530
  %v1532 = vsel %vm194, %v1529, %v1531
  %v1533 = vsel %vm194, %v1527, %v1529
  %v1534 = vsel %vm194, %v1525, %v1527
  %v1535 = vsel %vm194, %v1531, %v1525
  %v1536 = vmul.f32 %v1535, %v202
  %v1537 = vmul.f32 %v1534, %v206
  %v1538 = vmul.f32 %v1533, %v210
  %v1539 = vmul.f32 %v1532, %v214
  %1540 = vst [vmem:[#allocation2 + $0x60] sm:$0xff] %v1536
  %1541 = vst [vmem:[#allocation2 + $0x68] sm:$0xff] %v1537
  %1542 = vst [vmem:[#allocation2 + $0x70] sm:$0xff] %v1538
  %1543 = vst [vmem:[#allocation2 + $0x78] sm:$0xff] %v1539
  %1544 = vst [vmem:[#allocation2 + $0x80] sm:$0xff] %v922
  %1545 = vst [vmem:[#allocation2 + $0x88] sm:$0xff] %v923
  %1546 = vst [vmem:[#allocation2 + $0x90] sm:$0xff] %v924
  %1547 = vst [vmem:[#allocation2 + $0x98] sm:$0xff] %v925
  %1548 = vrot.lane.b32.xlu0 %v922, 127
  %v1549 = vpop.permute.xlu0 %1548
  %1550 = vrot.lane.b32.xlu0 %v923, 127
  %v1551 = vpop.permute.xlu0 %1550
  %1552 = vrot.lane.b32.xlu0 %v924, 127
  %v1553 = vpop.permute.xlu0 %1552
  %1554 = vrot.lane.b32.xlu0 %v925, 127
  %v1555 = vpop.permute.xlu0 %1554
  %v1556 = vsel %vm235, %v1553, %v1555
  %v1557 = vsel %vm235, %v1551, %v1553
  %v1558 = vsel %vm235, %v1549, %v1551
  %v1559 = vsel %vm235, %v1555, %v1549
  %v1560 = vmul.f32 %v1558, %v243
  %v1561 = vmul.f32 %v1557, %v247
  %v1562 = vmul.f32 %v1556, %v251
  %v1563 = vmul.f32 %v1559, %v255
  %1564 = vst [vmem:[#allocation2 + $0xa0] sm:$0xff] %v1560
  %1565 = vst [vmem:[#allocation2 + $0xa8] sm:$0xff] %v1561
  %1566 = vst [vmem:[#allocation2 + $0xb0] sm:$0xff] %v1562
  %1567 = vst [vmem:[#allocation2 + $0xb8] sm:$0xff] %v1563
  %1568 = vrot.lane.b32.xlu0 %v922, 113
  %v1569 = vpop.permute.xlu0 %1568
  %1570 = vrot.lane.b32.xlu0 %v923, 113
  %v1571 = vpop.permute.xlu0 %1570
  %1572 = vrot.lane.b32.xlu0 %v924, 113
  %v1573 = vpop.permute.xlu0 %1572
  %1574 = vrot.lane.b32.xlu0 %v925, 113
  %v1575 = vpop.permute.xlu0 %1574
  %v1576 = vsel %vm272, %v1573, %v1575
  %v1577 = vsel %vm272, %v1571, %v1573
  %v1578 = vsel %vm272, %v1569, %v1571
  %v1579 = vsel %vm272, %v1575, %v1569
  %v1580 = vmul.f32 %v1578, %v280
  %v1581 = vmul.f32 %v1577, %v284
  %v1582 = vmul.f32 %v1576, %v288
  %v1583 = vmul.f32 %v1579, %v292
  %1584 = vst [vmem:[#allocation2 + $0xc0] sm:$0xff] %v1580
  %1585 = vst [vmem:[#allocation2 + $0xc8] sm:$0xff] %v1581
  %1586 = vst [vmem:[#allocation2 + $0xd0] sm:$0xff] %v1582
  %1587 = vst [vmem:[#allocation2 + $0xd8] sm:$0xff] %v1583
  %1588 = vrot.lane.b32.xlu0 %v922, 112
  %v1589 = vpop.permute.xlu0 %1588
  %1590 = vrot.lane.b32.xlu0 %v923, 112
  %v1591 = vpop.permute.xlu0 %1590
  %1592 = vrot.lane.b32.xlu0 %v924, 112
  %v1593 = vpop.permute.xlu0 %1592
  %1594 = vrot.lane.b32.xlu0 %v925, 112
  %v1595 = vpop.permute.xlu0 %1594
  %v1596 = vsel %vm309, %v1593, %v1595
  %v1597 = vsel %vm309, %v1591, %v1593
  %v1598 = vsel %vm309, %v1589, %v1591
  %v1599 = vsel %vm309, %v1595, %v1589
  %v1600 = vmul.f32 %v1598, %v317
  %v1601 = vmul.f32 %v1597, %v321
  %v1602 = vmul.f32 %v1596, %v325
  %v1603 = vmul.f32 %v1599, %v329
  %1604 = vst [vmem:[#allocation2 + $0xe0] sm:$0xff] %v1600
  %1605 = vst [vmem:[#allocation2 + $0xe8] sm:$0xff] %v1601
  %1606 = vst [vmem:[#allocation2 + $0xf0] sm:$0xff] %v1602
  %1607 = vst [vmem:[#allocation2 + $0xf8] sm:$0xff] %v1603
  %1608 = vrot.lane.b32.xlu0 %v922, 111
  %v1609 = vpop.permute.xlu0 %1608
  %1610 = vrot.lane.b32.xlu0 %v923, 111
  %v1611 = vpop.permute.xlu0 %1610
  %1612 = vrot.lane.b32.xlu0 %v924, 111
  %v1613 = vpop.permute.xlu0 %1612
  %1614 = vrot.lane.b32.xlu0 %v925, 111
  %v1615 = vpop.permute.xlu0 %1614
  %v1616 = vsel %vm346, %v1613, %v1615
  %v1617 = vsel %vm346, %v1611, %v1613
  %v1618 = vsel %vm346, %v1609, %v1611
  %v1619 = vsel %vm346, %v1615, %v1609
  %v1620 = vmul.f32 %v1618, %v354
  %v1621 = vmul.f32 %v1617, %v358
  %v1622 = vmul.f32 %v1616, %v362
  %v1623 = vmul.f32 %v1619, %v366
  %1624 = vst [vmem:[#allocation2 + $0x100] sm:$0xff] %v1620
  %1625 = vst [vmem:[#allocation2 + $0x108] sm:$0xff] %v1621
  %1626 = vst [vmem:[#allocation2 + $0x110] sm:$0xff] %v1622
  %1627 = vst [vmem:[#allocation2 + $0x118] sm:$0xff] %v1623
  %v1628 = vld [vmem:[%s12] sm:$0xff]
  %v1629 = vld [vmem:[#allocation2] sm:$0xff]
  %v1630 = vld [vmem:[#allocation2 + $0x8] sm:$0xff]
  %v1631 = vld [vmem:[#allocation2 + $0x10] sm:$0xff]
  %v1632 = vld [vmem:[#allocation2 + $0x18] sm:$0xff]
  %v1633 = vld [vmem:[#allocation2 + $0x20] sm:$0xff]
  %v1634 = vld [vmem:[#allocation2 + $0x28] sm:$0xff]
  %v1635 = vld [vmem:[#allocation2 + $0x30] sm:$0xff]
  %v1636 = vld [vmem:[#allocation2 + $0x38] sm:$0xff]
  %v1637 = vld [vmem:[#allocation2 + $0x40] sm:$0xff]
  %v1638 = vld [vmem:[#allocation2 + $0x48] sm:$0xff]
  %v1639 = vld [vmem:[#allocation2 + $0x50] sm:$0xff]
  %v1640 = vld [vmem:[#allocation2 + $0x58] sm:$0xff]
  %v1641 = vld [vmem:[#allocation2 + $0x60] sm:$0xff]
  %v1642 = vld [vmem:[#allocation2 + $0x68] sm:$0xff]
  %v1643 = vld [vmem:[#allocation2 + $0x70] sm:$0xff]
  %v1644 = vld [vmem:[#allocation2 + $0x78] sm:$0xff]
  %v1645 = vld [vmem:[#allocation2 + $0x80] sm:$0xff]
  %v1646 = vld [vmem:[#allocation2 + $0x88] sm:$0xff]
  %v1647 = vld [vmem:[#allocation2 + $0x90] sm:$0xff]
  %v1648 = vld [vmem:[#allocation2 + $0x98] sm:$0xff]
  %v1649 = vld [vmem:[#allocation2 + $0xa0] sm:$0xff]
  %v1650 = vld [vmem:[#allocation2 + $0xa8] sm:$0xff]
  %v1651 = vld [vmem:[#allocation2 + $0xb0] sm:$0xff]
  %v1652 = vld [vmem:[#allocation2 + $0xb8] sm:$0xff]
  %v1653 = vld [vmem:[#allocation2 + $0xc0] sm:$0xff]
  %v1654 = vld [vmem:[#allocation2 + $0xc8] sm:$0xff]
  %v1655 = vld [vmem:[#allocation2 + $0xd0] sm:$0xff]
  %v1656 = vld [vmem:[#allocation2 + $0xd8] sm:$0xff]
  %v1657 = vld [vmem:[#allocation2 + $0xe0] sm:$0xff]
  %v1658 = vld [vmem:[#allocation2 + $0xe8] sm:$0xff]
  %v1659 = vld [vmem:[#allocation2 + $0xf0] sm:$0xff]
  %v1660 = vld [vmem:[#allocation2 + $0xf8] sm:$0xff]
  %v1661 = vld [vmem:[#allocation2 + $0x100] sm:$0xff]
  %v1662 = vld [vmem:[#allocation2 + $0x108] sm:$0xff]
  %v1663 = vld [vmem:[#allocation2 + $0x110] sm:$0xff]
  %v1664 = vld [vmem:[#allocation2 + $0x118] sm:$0xff]
  %v1665 = vld [vmem:[%s13] sm:$0xff]
  %1667 = vset.pattern.permute.xlu0 0
  %1668 = vperm.xlu0 %1667, %v1665
  %v1669 = vpop.permute.xlu0 %1668
  %v1672 = vsel %vm416, %v1628, 0
  %1674 = vmatprep.subr.mxu0 0.0
  %1675 = vmatpush1.msra.mxu0 0.0
  %1676 = vmatprep.subr.mxu0 0.0
  %1677 = vmatpush1.msra.mxu0 0.0
  %1678 = vmatprep.subr.mxu0 0.0
  %1679 = vmatpush1.msra.mxu0 0.0
  %1680 = vmatprep.subr.mxu0 0.0
  %1681 = vmatpush1.msra.mxu0 0.0
  %1682 = vmatprep.subr.mxu0 0.0
  %1683 = vmatpush1.msra.mxu0 0.0
  %1684 = vmatprep.subr.mxu0 0.0
  %1685 = vmatpush1.msra.mxu0 0.0
  %1686 = vmatprep.subr.mxu0 0.0
  %1687 = vmatpush1.msra.mxu0 0.0
  %1688 = vmatprep.subr.mxu0 %v1662
  %1689 = vmatpush1.msra.mxu0 %v1661
  %1690 = vmatprep.subr.mxu0 %v1658
  %1691 = vmatpush1.msra.mxu0 %v1657
  %1692 = vmatprep.subr.mxu0 %v1654
  %1693 = vmatpush1.msra.mxu0 %v1653
  %1694 = vmatprep.subr.mxu0 %v1650
  %1695 = vmatpush1.msra.mxu0 %v1649
  %1696 = vmatprep.subr.mxu0 %v1646
  %1697 = vmatpush1.msra.mxu0 %v1645
  %1698 = vmatprep.subr.mxu0 %v1642
  %1699 = vmatpush1.msra.mxu0 %v1641
  %1700 = vmatprep.subr.mxu0 %v1638
  %1701 = vmatpush1.msra.mxu0 %v1637
  %1702 = vmatprep.subr.mxu0 %v1634
  %1703 = vmatpush1.msra.mxu0 %v1633
  %1704 = vmatprep.subr.mxu0 %v1630
  %1705 = vmatpush1.msra.mxu0 %v1629
  %1706 = vmatprep.subr.mxu0 0.0
  %1707 = vmatpush2.msra.mxu0 0.0
  %1708 = vmatprep.subr.mxu0 0.0
  %1709 = vmatpush2.msra.mxu0 0.0
  %1710 = vmatprep.subr.mxu0 0.0
  %1711 = vmatpush2.msra.mxu0 0.0
  %1712 = vmatprep.subr.mxu0 0.0
  %1713 = vmatpush2.msra.mxu0 0.0
  %1714 = vmatprep.subr.mxu0 0.0
  %1715 = vmatpush2.msra.mxu0 0.0
  %1716 = vmatprep.subr.mxu0 0.0
  %1717 = vmatpush2.msra.mxu0 0.0
  %1718 = vmatprep.subr.mxu0 0.0
  %1719 = vmatpush2.msra.mxu0 0.0
  %1720 = vmatprep.subr.mxu0 0.0
  %1721 = vmatpush2.msra.mxu0 0.0
  %1722 = vmatprep.subr.mxu0 0.0
  %1723 = vmatpush2.msra.mxu0 0.0
  %1724 = vmatprep.subr.mxu0 0.0
  %1725 = vmatpush2.msra.mxu0 0.0
  %1726 = vmatprep.subr.mxu0 0.0
  %1727 = vmatpush2.msra.mxu0 0.0
  %1728 = vmatprep.subr.mxu0 0.0
  %1729 = vmatpush2.msra.mxu0 0.0
  %1730 = vmatprep.subr.mxu0 0.0
  %1731 = vmatpush2.msra.mxu0 0.0
  %1732 = vmatprep.subr.mxu0 0.0
  %1733 = vmatpush2.msra.mxu0 0.0
  %1734 = vmatprep.subr.mxu0 0.0
  %1735 = vmatpush2.msra.mxu0 0.0
  %1736 = vmatprep.subr.mxu0 0.0
  %1737 = vmatpush2.msra.mxu0 0.0
  %1738 = vmatprep.mubr.f32.mxu0 0.0
  %1739 = vmatmul.mubr.f32.gmra.mxu0 %v1672
  %v1740 = vpop.f32.mrf.mxu0
  %v1741 = vadd.f32 %v1669, %v1740
  %v1742 = vpop.f32.mrf.mxu0
  %v1743 = vadd.f32 %v1669, %v1742
  %1744 = vdwg.mxu0
  %1745 = vmatprep.subr.mxu0 0.0
  %1746 = vmatpush1.msra.mxu0 0.0
  %1747 = vmatprep.subr.mxu0 0.0
  %1748 = vmatpush1.msra.mxu0 0.0
  %1749 = vmatprep.subr.mxu0 0.0
  %1750 = vmatpush1.msra.mxu0 0.0
  %1751 = vmatprep.subr.mxu0 0.0
  %1752 = vmatpush1.msra.mxu0 0.0
  %1753 = vmatprep.subr.mxu0 0.0
  %1754 = vmatpush1.msra.mxu0 0.0
  %1755 = vmatprep.subr.mxu0 0.0
  %1756 = vmatpush1.msra.mxu0 0.0
  %1757 = vmatprep.subr.mxu0 0.0
  %1758 = vmatpush1.msra.mxu0 0.0
  %1759 = vmatprep.subr.mxu0 %v1664
  %1760 = vmatpush1.msra.mxu0 %v1663
  %1761 = vmatprep.subr.mxu0 %v1660
  %1762 = vmatpush1.msra.mxu0 %v1659
  %1763 = vmatprep.subr.mxu0 %v1656
  %1764 = vmatpush1.msra.mxu0 %v1655
  %1765 = vmatprep.subr.mxu0 %v1652
  %1766 = vmatpush1.msra.mxu0 %v1651
  %1767 = vmatprep.subr.mxu0 %v1648
  %1768 = vmatpush1.msra.mxu0 %v1647
  %1769 = vmatprep.subr.mxu0 %v1644
  %1770 = vmatpush1.msra.mxu0 %v1643
  %1771 = vmatprep.subr.mxu0 %v1640
  %1772 = vmatpush1.msra.mxu0 %v1639
  %1773 = vmatprep.subr.mxu0 %v1636
  %1774 = vmatpush1.msra.mxu0 %v1635
  %1775 = vmatprep.subr.mxu0 %v1632
  %1776 = vmatpush1.msra.mxu0 %v1631
  %1777 = vmatprep.subr.mxu0 0.0
  %1778 = vmatpush2.msra.mxu0 0.0
  %1779 = vmatprep.subr.mxu0 0.0
  %1780 = vmatpush2.msra.mxu0 0.0
  %1781 = vmatprep.subr.mxu0 0.0
  %1782 = vmatpush2.msra.mxu0 0.0
  %1783 = vmatprep.subr.mxu0 0.0
  %1784 = vmatpush2.msra.mxu0 0.0
  %1785 = vmatprep.subr.mxu0 0.0
  %1786 = vmatpush2.msra.mxu0 0.0
  %1787 = vmatprep.subr.mxu0 0.0
  %1788 = vmatpush2.msra.mxu0 0.0
  %1789 = vmatprep.subr.mxu0 0.0
  %1790 = vmatpush2.msra.mxu0 0.0
  %1791 = vmatprep.subr.mxu0 0.0
  %1792 = vmatpush2.msra.mxu0 0.0
  %1793 = vmatprep.subr.mxu0 0.0
  %1794 = vmatpush2.msra.mxu0 0.0
  %1795 = vmatprep.subr.mxu0 0.0
  %1796 = vmatpush2.msra.mxu0 0.0
  %1797 = vmatprep.subr.mxu0 0.0
  %1798 = vmatpush2.msra.mxu0 0.0
  %1799 = vmatprep.subr.mxu0 0.0
  %1800 = vmatpush2.msra.mxu0 0.0
  %1801 = vmatprep.subr.mxu0 0.0
  %1802 = vmatpush2.msra.mxu0 0.0
  %1803 = vmatprep.subr.mxu0 0.0
  %1804 = vmatpush2.msra.mxu0 0.0
  %1805 = vmatprep.subr.mxu0 0.0
  %1806 = vmatpush2.msra.mxu0 0.0
  %1807 = vmatprep.subr.mxu0 0.0
  %1808 = vmatpush2.msra.mxu0 0.0
  %1809 = vmatprep.mubr.f32.mxu0 0.0
  %1810 = vmatmul.mubr.f32.gmra.mxu0 %v1672
  %v1811 = vpop.f32.mrf.mxu0
  %v1812 = vadd.f32 %v1669, %v1811
  %v1813 = vpop.f32.mrf.mxu0
  %v1814 = vadd.f32 %v1669, %v1813
  %1815 = vdwg.mxu0
  %v1816 = vld [vmem:[%s15] sm:$0xff]
  %v1817 = vld [vmem:[%s15 + $0x8] sm:$0xff]
  %v1818 = vld [vmem:[%s15 + $0x10] sm:$0xff]
  %v1819 = vld [vmem:[%s15 + $0x18] sm:$0xff]
  %v1820 = vld [vmem:[%s15 + $0x20] sm:$0xff]
  %v1821 = vld [vmem:[%s15 + $0x28] sm:$0xff]
  %v1822 = vld [vmem:[%s15 + $0x30] sm:$0xff]
  %v1823 = vld [vmem:[%s15 + $0x38] sm:$0xff]
  %v1824 = vld [vmem:[%s15 + $0x40] sm:$0xff]
  %v1825 = vld [vmem:[%s15 + $0x48] sm:$0xff]
  %v1826 = vld [vmem:[%s15 + $0x50] sm:$0xff]
  %v1827 = vld [vmem:[%s15 + $0x58] sm:$0xff]
  %v1828 = vld [vmem:[%s15 + $0x60] sm:$0xff]
  %v1829 = vld [vmem:[%s15 + $0x68] sm:$0xff]
  %v1830 = vld [vmem:[%s15 + $0x70] sm:$0xff]
  %v1831 = vld [vmem:[%s15 + $0x78] sm:$0xff]
  %v1832 = vld [vmem:[%s15 + $0x80] sm:$0xff]
  %v1833 = vld [vmem:[%s15 + $0x88] sm:$0xff]
  %v1834 = vld [vmem:[%s15 + $0x90] sm:$0xff]
  %v1835 = vld [vmem:[%s15 + $0x98] sm:$0xff]
  %v1836 = vld [vmem:[%s15 + $0xa0] sm:$0xff]
  %v1837 = vld [vmem:[%s15 + $0xa8] sm:$0xff]
  %v1838 = vld [vmem:[%s15 + $0xb0] sm:$0xff]
  %v1839 = vld [vmem:[%s15 + $0xb8] sm:$0xff]
  %v1840 = vld [vmem:[%s15 + $0xc0] sm:$0xff]
  %v1841 = vld [vmem:[%s15 + $0xc8] sm:$0xff]
  %v1842 = vld [vmem:[%s15 + $0xd0] sm:$0xff]
  %v1843 = vld [vmem:[%s15 + $0xd8] sm:$0xff]
  %v1844 = vld [vmem:[%s15 + $0xe0] sm:$0xff]
  %v1845 = vld [vmem:[%s15 + $0xe8] sm:$0xff]
  %v1846 = vld [vmem:[%s15 + $0xf0] sm:$0xff]
  %v1847 = vld [vmem:[%s15 + $0xf8] sm:$0xff]
  %1848 = vmatprep.subr.mxu0 0.0
  %1849 = vmatpush1.msra.mxu0 %v1831
  %1850 = vmatprep.subr.mxu0 0.0
  %1851 = vmatpush1.msra.mxu0 %v1830
  %1852 = vmatprep.subr.mxu0 0.0
  %1853 = vmatpush1.msra.mxu0 %v1829
  %1854 = vmatprep.subr.mxu0 0.0
  %1855 = vmatpush1.msra.mxu0 %v1828
  %1856 = vmatprep.subr.mxu0 0.0
  %1857 = vmatpush1.msra.mxu0 %v1827
  %1858 = vmatprep.subr.mxu0 0.0
  %1859 = vmatpush1.msra.mxu0 %v1826
  %1860 = vmatprep.subr.mxu0 0.0
  %1861 = vmatpush1.msra.mxu0 %v1825
  %1862 = vmatprep.subr.mxu0 0.0
  %1863 = vmatpush1.msra.mxu0 %v1824
  %1864 = vmatprep.subr.mxu0 0.0
  %1865 = vmatpush1.msra.mxu0 %v1823
  %1866 = vmatprep.subr.mxu0 0.0
  %1867 = vmatpush1.msra.mxu0 %v1822
  %1868 = vmatprep.subr.mxu0 0.0
  %1869 = vmatpush1.msra.mxu0 %v1821
  %1870 = vmatprep.subr.mxu0 0.0
  %1871 = vmatpush1.msra.mxu0 %v1820
  %1872 = vmatprep.subr.mxu0 0.0
  %1873 = vmatpush1.msra.mxu0 %v1819
  %1874 = vmatprep.subr.mxu0 0.0
  %1875 = vmatpush1.msra.mxu0 %v1818
  %1876 = vmatprep.subr.mxu0 0.0
  %1877 = vmatpush1.msra.mxu0 %v1817
  %1878 = vmatprep.subr.mxu0 0.0
  %1879 = vmatpush1.msra.mxu0 %v1816
  %1880 = vmatprep.subr.mxu0 0.0
  %1881 = vmatpush2.msra.mxu0 %v1847
  %1882 = vmatprep.subr.mxu0 0.0
  %1883 = vmatpush2.msra.mxu0 %v1846
  %1884 = vmatprep.subr.mxu0 0.0
  %1885 = vmatpush2.msra.mxu0 %v1845
  %1886 = vmatprep.subr.mxu0 0.0
  %1887 = vmatpush2.msra.mxu0 %v1844
  %1888 = vmatprep.subr.mxu0 0.0
  %1889 = vmatpush2.msra.mxu0 %v1843
  %1890 = vmatprep.subr.mxu0 0.0
  %1891 = vmatpush2.msra.mxu0 %v1842
  %1892 = vmatprep.subr.mxu0 0.0
  %1893 = vmatpush2.msra.mxu0 %v1841
  %1894 = vmatprep.subr.mxu0 0.0
  %1895 = vmatpush2.msra.mxu0 %v1840
  %1896 = vmatprep.subr.mxu0 0.0
  %1897 = vmatpush2.msra.mxu0 %v1839
  %1898 = vmatprep.subr.mxu0 0.0
  %1899 = vmatpush2.msra.mxu0 %v1838
  %1900 = vmatprep.subr.mxu0 0.0
  %1901 = vmatpush2.msra.mxu0 %v1837
  %1902 = vmatprep.subr.mxu0 0.0
  %1903 = vmatpush2.msra.mxu0 %v1836
  %1904 = vmatprep.subr.mxu0 0.0
  %1905 = vmatpush2.msra.mxu0 %v1835
  %1906 = vmatprep.subr.mxu0 0.0
  %1907 = vmatpush2.msra.mxu0 %v1834
  %1908 = vmatprep.subr.mxu0 0.0
  %1909 = vmatpush2.msra.mxu0 %v1833
  %1910 = vmatprep.subr.mxu0 0.0
  %1911 = vmatpush2.msra.mxu0 %v1832
  %1912 = vmatprep.mubr.f32.mxu0 %v1743
  %1913 = vmatmul.mubr.f32.gmra.mxu0 %v1741
  %v1914 = vpop.f32.mrf.mxu0
  %v1915 = vadd.f32 0.0, %v1914
  %v1916 = vpop.f32.mrf.mxu0
  %1917 = vdwg.mxu0
  %1918 = vmatprep.subr.mxu0 0.0
  %1919 = vmatpush1.msra.mxu0 %v1831
  %1920 = vmatprep.subr.mxu0 0.0
  %1921 = vmatpush1.msra.mxu0 %v1830
  %1922 = vmatprep.subr.mxu0 0.0
  %1923 = vmatpush1.msra.mxu0 %v1829
  %1924 = vmatprep.subr.mxu0 0.0
  %1925 = vmatpush1.msra.mxu0 %v1828
  %1926 = vmatprep.subr.mxu0 0.0
  %1927 = vmatpush1.msra.mxu0 %v1827
  %1928 = vmatprep.subr.mxu0 0.0
  %1929 = vmatpush1.msra.mxu0 %v1826
  %1930 = vmatprep.subr.mxu0 0.0
  %1931 = vmatpush1.msra.mxu0 %v1825
  %1932 = vmatprep.subr.mxu0 0.0
  %1933 = vmatpush1.msra.mxu0 %v1824
  %1934 = vmatprep.subr.mxu0 0.0
  %1935 = vmatpush1.msra.mxu0 %v1823
  %1936 = vmatprep.subr.mxu0 0.0
  %1937 = vmatpush1.msra.mxu0 %v1822
  %1938 = vmatprep.subr.mxu0 0.0
  %1939 = vmatpush1.msra.mxu0 %v1821
  %1940 = vmatprep.subr.mxu0 0.0
  %1941 = vmatpush1.msra.mxu0 %v1820
  %1942 = vmatprep.subr.mxu0 0.0
  %1943 = vmatpush1.msra.mxu0 %v1819
  %1944 = vmatprep.subr.mxu0 0.0
  %1945 = vmatpush1.msra.mxu0 %v1818
  %1946 = vmatprep.subr.mxu0 0.0
  %1947 = vmatpush1.msra.mxu0 %v1817
  %1948 = vmatprep.subr.mxu0 0.0
  %1949 = vmatpush1.msra.mxu0 %v1816
  %1950 = vmatprep.subr.mxu0 0.0
  %1951 = vmatpush2.msra.mxu0 %v1847
  %1952 = vmatprep.subr.mxu0 0.0
  %1953 = vmatpush2.msra.mxu0 %v1846
  %1954 = vmatprep.subr.mxu0 0.0
  %1955 = vmatpush2.msra.mxu0 %v1845
  %1956 = vmatprep.subr.mxu0 0.0
  %1957 = vmatpush2.msra.mxu0 %v1844
  %1958 = vmatprep.subr.mxu0 0.0
  %1959 = vmatpush2.msra.mxu0 %v1843
  %1960 = vmatprep.subr.mxu0 0.0
  %1961 = vmatpush2.msra.mxu0 %v1842
  %1962 = vmatprep.subr.mxu0 0.0
  %1963 = vmatpush2.msra.mxu0 %v1841
  %1964 = vmatprep.subr.mxu0 0.0
  %1965 = vmatpush2.msra.mxu0 %v1840
  %1966 = vmatprep.subr.mxu0 0.0
  %1967 = vmatpush2.msra.mxu0 %v1839
  %1968 = vmatprep.subr.mxu0 0.0
  %1969 = vmatpush2.msra.mxu0 %v1838
  %1970 = vmatprep.subr.mxu0 0.0
  %1971 = vmatpush2.msra.mxu0 %v1837
  %1972 = vmatprep.subr.mxu0 0.0
  %1973 = vmatpush2.msra.mxu0 %v1836
  %1974 = vmatprep.subr.mxu0 0.0
  %1975 = vmatpush2.msra.mxu0 %v1835
  %1976 = vmatprep.subr.mxu0 0.0
  %1977 = vmatpush2.msra.mxu0 %v1834
  %1978 = vmatprep.subr.mxu0 0.0
  %1979 = vmatpush2.msra.mxu0 %v1833
  %1980 = vmatprep.subr.mxu0 0.0
  %1981 = vmatpush2.msra.mxu0 %v1832
  %1982 = vmatprep.mubr.f32.mxu0 %v1814
  %1983 = vmatmul.mubr.f32.gmra.mxu0 %v1812
  %v1984 = vpop.f32.mrf.mxu0
  %v1985 = vadd.f32 0.0, %v1984
  %v1986 = vpop.f32.mrf.mxu0
  %1987 = vdwg.mxu0
  %1989 = vrot.lane.b32.xlu0 %v1985, 64
  %v1990 = vpop.permute.xlu0 %1989
  %v1992 = vsel %vm1302, %v1915, %v1990
  %v1993 = vadd.f32 %v1992, %v1204
  %v1994 = vmax.f32 %v1993, 0.0
  %1995 = vst [vmem:[%s19] sm:$0xff] %v1994
  // Predicated region
  $region74: #{hr_module_forward.1} parent=0 // pred_check
    _
  $region75: #{hr_module_forward.1} parent=0 // pred_check_branch
    %1997 = sbr.rel (0) target = $region77
  $region76: #{hr_module_forward.1} parent=0 // pred_region
    _
  $region77: #{hr_module_forward.1} parent=0 // pred_fallthru
    _
  // Predicated region
  $region78: #{hr_module_forward.1} parent=0 // pred_check
    _
  $region79: #{hr_module_forward.1} parent=0 // pred_check_branch
    %1999 = sbr.rel (0) target = $region81
  $region80: #{hr_module_forward.1} parent=0 // pred_region
    _
  $region81: #{hr_module_forward.1} parent=0 // pred_fallthru
    _
  // Predicated region
  $region82: #{hr_module_forward.1} parent=0 // pred_check
    _
  $region83: #{hr_module_forward.1} parent=0 // pred_check_branch
    %2001 = sbr.rel (0) target = $region85
  $region84: #{hr_module_forward.1} parent=0 // pred_region
    _
  $region85: #{hr_module_forward.1} parent=0 // pred_fallthru
    _
  // Predicated region
  $region86: #{hr_module_forward.1} parent=0 // pred_check
    _
  $region87: #{hr_module_forward.1} parent=0 // pred_check_branch
    %2003 = sbr.rel (0) target = $region89
  $region88: #{hr_module_forward.1} parent=0 // pred_region
    _
  $region89: #{hr_module_forward.1} parent=0 // pred_fallthru
    _

</llo_original>
